<compile_context>
chip_gen: v5e
topology: v5e:2x2
jax: 0.10.0
libtpu: 0.0.40
codegen_flags: <defaults>
</compile_context>

<pallas_src>
import jax
import jax.numpy as jnp
from jax.experimental import pallas as pl
from jax.experimental.pallas import tpu as pltpu

NUM_SUMS = 7
# acc rows: 0 sum(bce*positive)      1 sum(positive)           2 sum(mask)
#           3 sum(|thr-tmap|*tmask)  4 sum(tmask)
#           5 sum(binary*positive)   6 sum(binary*mask)


def _loss_terms_kernel(prob_ref, gt_ref, mask_ref, binary_ref,
                       thresh_ref, tmap_ref, tmask_ref,
                       negmap_ref, sums_ref, acc_ref):
    j = pl.program_id(1)

    @pl.when(j == 0)
    def _init():
        acc_ref[...] = jnp.zeros_like(acc_ref)

    prob = prob_ref[...]
    binary = binary_ref[...]
    thresh = thresh_ref[...]
    tmap = tmap_ref[...]
    # 0/1 maps arrive as bf16 (exact); upcast immediately (v5e VPU has no bf16 path).
    gt = gt_ref[...].astype(jnp.float32)
    mask = mask_ref[...].astype(jnp.float32)
    tmask = tmask_ref[...].astype(jnp.float32)

    positive = gt * mask
    negative = mask - positive          # == (1 - gt) * mask for a {0,1} gt

    # gt is a {0,1} map -> a single transcendental per element (EUP):
    #   bce = -clamp(log(p if gt==1 else 1-p), -100)   (torch's BCE log clamp)
    p_sel = jnp.where(gt != 0.0, prob, 1.0 - prob)
    bce = -jnp.maximum(jnp.log(p_sel), -100.0)

    # Per-pixel negative losses, needed outside for hard-negative mining.
    negmap_ref[...] = bce * negative

    # Elementwise (VPU) accumulation into tile-shaped slabs; no per-tile
    # cross-lane reductions.
    acc_ref[0] = acc_ref[0] + bce * positive
    acc_ref[1] = acc_ref[1] + positive
    acc_ref[2] = acc_ref[2] + mask
    acc_ref[3] = acc_ref[3] + jnp.abs(thresh - tmap) * tmask
    acc_ref[4] = acc_ref[4] + tmask
    acc_ref[5] = acc_ref[5] + binary * positive
    acc_ref[6] = acc_ref[6] + binary * mask

    # Single cross-lane reduce per core, only at the last grid step.
    @pl.when(j == pl.num_programs(1) - 1)
    def _finalize():
        sub = jax.lax.broadcasted_iota(jnp.int32, (1, 8, 128), 1)
        out = jnp.zeros((1, 8, 128), jnp.float32)
        for s in range(NUM_SUMS):
            out = jnp.where(sub == s, jnp.sum(acc_ref[s]), out)
        sums_ref[...] = out


def _round_up(x, m):
    return ((x + m - 1) // m) * m


def _squeeze_c(x):
    return x[:, 0] if x.ndim == 4 else x


def _sum_of_topk_nonneg(x, k):
    """Exact sum of the k largest entries of a non-negative f32 vector.

    Sort-free: 31-step bitwise binary search for the k-th largest value
    (for non-negative f32, value order == uint32 bit order), then one masked
    sum with exact tie handling.  Replaces the O(n log n) full sort.
    """
    xa = jnp.abs(x)                        # clears any -0.0 so bit order == value order
    bits = jax.lax.bitcast_convert_type(xa, jnp.uint32)
    k_i = k.astype(jnp.int32)
    bit_masks = jnp.left_shift(jnp.uint32(1),
                               jnp.arange(30, -1, -1).astype(jnp.uint32))

    def body(i, t_bits):
        cand = t_bits | bit_masks[i]
        cnt = jnp.sum(bits >= cand, dtype=jnp.int32)
        return jnp.where(cnt >= k_i, cand, t_bits)

    t_bits = jax.lax.fori_loop(0, 31, body, jnp.uint32(0))
    t = jax.lax.bitcast_convert_type(t_bits, jnp.float32)   # k-th largest value
    above = xa > t
    sum_above = jnp.sum(jnp.where(above, xa, 0.0))
    cnt_above = jnp.sum(above, dtype=jnp.float32)
    return jnp.where(k > 0, sum_above + (k - cnt_above) * t, 0.0)


def l1_balance_ce_loss(pred, target, eps=1e-6, l1_scale=10.0, bce_scale=5.0,
                       negative_ratio=3.0):
    prob = _squeeze_c(pred['prob']).astype(jnp.float32)
    binary = _squeeze_c(pred['binary']).astype(jnp.float32)
    thresh = _squeeze_c(pred['thresh']).astype(jnp.float32)
    tmap = _squeeze_c(target['thresh_map']).astype(jnp.float32)
    gt = _squeeze_c(target['gt'])
    mask = _squeeze_c(target['mask'])
    tmask = _squeeze_c(target['thresh_mask'])

    N, H, W = prob.shape
    P = N * H * W

    # ---- tiling ------------------------------------------------------------
    TL = 1024                     # lane width: large multiple of 128 (unmasked stores)
    NCORES = 2                    # leading "parallel" grid axis (v7x megacore)
    r_needed = -(-P // TL)
    # sublane rows per block: multiple of 16 so bf16 blocks tile cleanly.
    TR = min(128, _round_up(max(1, -(-r_needed // NCORES)), 16))
    R = _round_up(r_needed, NCORES * TR)
    J = R // (NCORES * TR)
    P_pad = R * TL

    def prep(x, dtype):
        x = x.reshape(-1).astype(dtype)
        return jnp.pad(x, (0, P_pad - P)).reshape(R, TL)

    # Value tensors stay f32 (reference numerics); 0/1 maps go bf16 (exact).
    args = (prep(prob, jnp.float32), prep(gt, jnp.bfloat16),
            prep(mask, jnp.bfloat16), prep(binary, jnp.float32),
            prep(thresh, jnp.float32), prep(tmap, jnp.float32),
            prep(tmask, jnp.bfloat16))

    def data_spec():
        return pl.BlockSpec((TR, TL), lambda c, j: (c * J + j, 0))

    negmap, sums_out = pl.pallas_call(
        _loss_terms_kernel,
        grid=(NCORES, J),
        in_specs=[data_spec() for _ in range(7)],
        out_specs=(data_spec(),
                   pl.BlockSpec((1, 8, 128), lambda c, j: (c, 0, 0))),
        out_shape=(jax.ShapeDtypeStruct((R, TL), jnp.float32),
                   jax.ShapeDtypeStruct((NCORES, 8, 128), jnp.float32)),
        scratch_shapes=[pltpu.VMEM((NUM_SUMS, TR, TL), jnp.float32)],
        compiler_params=pltpu.CompilerParams(
            dimension_semantics=("parallel", "arbitrary"),
            vmem_limit_bytes=32 * 1024 * 1024),
    )(*args)

    # Combine per-core partial sums (tiny).
    sums = sums_out[:, :NUM_SUMS, 0].sum(axis=0)
    pos_loss_sum = sums[0]
    pos_cnt = sums[1]
    mask_sum = sums[2]
    l1_sum = sums[3]
    tmask_sum = sums[4]
    inter = sums[5]
    bin_mask_sum = sums[6]

    # Matches torch's int(...) conversions of the (0/1 mask) counts.
    positive_count = jnp.floor(pos_cnt)
    neg_cnt = mask_sum - pos_cnt
    negative_count = jnp.minimum(jnp.floor(neg_cnt),
                                 jnp.floor(positive_count * negative_ratio))

    # Hard-negative mining: exact sum of top-k negative losses, no sort.
    # (Padded zeros in negmap cannot change the top-k sum.)
    neg_topk_sum = _sum_of_topk_nonneg(negmap.reshape(-1), negative_count)

    bce_loss = (pos_loss_sum + neg_topk_sum) / (positive_count + negative_count + eps)

    # MaskL1Loss: returns 0 when the mask sums to 0.
    l1_loss = jnp.where(tmask_sum == 0.0, 0.0, l1_sum / tmask_sum)

    # DiceLoss (gt-sum of the union is the same quantity as pos_cnt).
    dice_loss = 1.0 - 2.0 * inter / (bin_mask_sum + pos_cnt + eps)

    loss = dice_loss + l1_scale * l1_loss + bce_scale * bce_loss
    metrics = dict(bce_loss=bce_loss, binary_loss=dice_loss, l1_loss=l1_loss)
    return loss, metrics


def _reference_loss(pred, target, eps=1e-6, l1_scale=10.0, bce_scale=5.0,
                    negative_ratio=3.0):
    """Pure-JAX reference (mirrors the PyTorch module)."""
    prob = _squeeze_c(pred['prob']).astype(jnp.float32).reshape(-1)
    binary = _squeeze_c(pred['binary']).astype(jnp.float32).reshape(-1)
    thresh = _squeeze_c(pred['thresh']).astype(jnp.float32).reshape(-1)
    gt = _squeeze_c(target['gt']).astype(jnp.float32).reshape(-1)
    mask = _squeeze_c(target['mask']).astype(jnp.float32).reshape(-1)
    tmap = _squeeze_c(target['thresh_map']).astype(jnp.float32).reshape(-1)
    tmask = _squeeze_c(target['thresh_mask']).astype(jnp.float32).reshape(-1)

    positive = gt * mask
    negative = (1.0 - gt) * mask
    bce = -(gt * jnp.maximum(jnp.log(prob), -100.0)
            + (1.0 - gt) * jnp.maximum(jnp.log(1.0 - prob), -100.0))
    positive_count = jnp.floor(positive.sum())
    negative_count = jnp.minimum(jnp.floor(negative.sum()),
                                 jnp.floor(positive_count * negative_ratio))
    neg_sorted = jnp.sort(bce * negative)[::-1]
    idx = jnp.arange(neg_sorted.shape[0], dtype=jnp.float32)
    neg_topk = jnp.sum(jnp.where(idx < negative_count, neg_sorted, 0.0))
    bce_loss = ((bce * positive).sum() + neg_topk) / (positive_count + negative_count + eps)
    tsum = tmask.sum()
    l1_loss = jnp.where(tsum == 0.0, 0.0, (jnp.abs(thresh - tmap) * tmask).sum() / tsum)
    dice_loss = 1.0 - 2.0 * (binary * positive).sum() / ((binary * mask).sum()
                                                         + positive.sum() + eps)
    return dice_loss + l1_scale * l1_loss + bce_scale * bce_loss


if __name__ == "__main__":
    key = jax.random.PRNGKey(0)
    N, C, H, W = 2, 1, 16, 16
    k = jax.random.split(key, 7)

    # Probabilities in (0, 1) as the DB heads would produce.
    prob = jax.nn.sigmoid(jax.random.normal(k[0], (N, C, H, W), jnp.float32))
    binary = jax.nn.sigmoid(jax.random.normal(k[1], (N, C, H, W), jnp.float32))
    thresh = jax.nn.sigmoid(jax.random.normal(k[2], (N, C, H, W), jnp.float32))

    gt = (jax.random.uniform(k[3], (N, C, H, W)) > 0.7).astype(jnp.float32)
    mask = (jax.random.uniform(k[4], (N, H, W)) > 0.1).astype(jnp.float32)
    thresh_map = jax.random.uniform(k[5], (N, H, W), jnp.float32)
    thresh_mask = (jax.random.uniform(k[6], (N, H, W)) > 0.5).astype(jnp.float32)

    pred = dict(prob=prob, binary=binary, thresh=thresh)
    target = dict(gt=gt, mask=mask, thresh_map=thresh_map, thresh_mask=thresh_mask)

    loss, metrics = l1_balance_ce_loss(pred, target)
    loss = jax.block_until_ready(loss)

    ref = jax.block_until_ready(_reference_loss(pred, target))
    assert bool(jnp.isfinite(loss)), "loss is not finite"
    assert abs(float(loss) - float(ref)) <= 1e-3 + 1e-3 * abs(float(ref)), \
        (float(loss), float(ref))

    print("KERNEL_OK")
</pallas_src>

<mosaic_0001>
module attributes {stable_mosaic.version = 11 : i64} {
  func.func @_loss_terms_kernel(%arg0: i32, %arg1: i32, %arg2: memref<16x1024xf32, #tpu.memory_space<vmem>>, %arg3: memref<16x1024xbf16, #tpu.memory_space<vmem>>, %arg4: memref<16x1024xbf16, #tpu.memory_space<vmem>>, %arg5: memref<16x1024xf32, #tpu.memory_space<vmem>>, %arg6: memref<16x1024xf32, #tpu.memory_space<vmem>>, %arg7: memref<16x1024xf32, #tpu.memory_space<vmem>>, %arg8: memref<16x1024xbf16, #tpu.memory_space<vmem>>, %arg9: memref<16x1024xf32, #tpu.memory_space<vmem>>, %arg10: memref<1x8x128xf32, #tpu.memory_space<vmem>>, %arg11: memref<7x16x1024xf32, #tpu.memory_space<vmem>>) attributes {dimension_semantics = [#tpu.dimension_semantics<parallel>, #tpu.dimension_semantics<arbitrary>], iteration_bounds = array<i64: 2, 1>, scalar_prefetch = 0 : i64, scratch_operands = 1 : i64, tpu.core_type = #tpu.core_type<tc>, window_params = [{transform_indices = @transform_0, window_bounds = array<i64: 16, 1024>}, {transform_indices = @transform_1, window_bounds = array<i64: 16, 1024>}, {transform_indices = @transform_2, window_bounds = array<i64: 16, 1024>}, {transform_indices = @transform_3, window_bounds = array<i64: 16, 1024>}, {transform_indices = @transform_4, window_bounds = array<i64: 16, 1024>}, {transform_indices = @transform_5, window_bounds = array<i64: 16, 1024>}, {transform_indices = @transform_6, window_bounds = array<i64: 16, 1024>}, {transform_indices = @transform_7, window_bounds = array<i64: 16, 1024>}, {transform_indices = @transform_8, window_bounds = array<i64: 1, 8, 128>}]} {
    %c0_i32 = arith.constant 0 : i32
    %0 = arith.cmpi eq, %arg1, %c0_i32 : i32
    %1 = arith.extui %0 : i1 to i32
    %c0_i32_0 = arith.constant 0 : i32
    %2 = arith.cmpi ne, %1, %c0_i32_0 : i32
    scf.if %2 {
      %cst_57 = arith.constant 0.000000e+00 : f32
      %78 = vector.broadcast %cst_57 : f32 to vector<7x16x1024xf32>
      %c0_58 = arith.constant 0 : index
      %c0_59 = arith.constant 0 : index
      %c0_60 = arith.constant 0 : index
      %79 = vector.load %arg11[%c0_58, %c0_59, %c0_60] : memref<7x16x1024xf32, #tpu.memory_space<vmem>>, vector<7x16x1024xf32>
      tpu.vector_store %arg11[%c0_58, %c0_59, %c0_60], %78 {strides = array<i32>} : memref<7x16x1024xf32, #tpu.memory_space<vmem>>, vector<7x16x1024xf32>,
    } else {
    }
    %c0 = arith.constant 0 : index
    %c0_1 = arith.constant 0 : index
    %3 = vector.load %arg2[%c0, %c0_1] : memref<16x1024xf32, #tpu.memory_space<vmem>>, vector<16x1024xf32>
    %c0_2 = arith.constant 0 : index
    %c0_3 = arith.constant 0 : index
    %4 = vector.load %arg5[%c0_2, %c0_3] : memref<16x1024xf32, #tpu.memory_space<vmem>>, vector<16x1024xf32>
    %c0_4 = arith.constant 0 : index
    %c0_5 = arith.constant 0 : index
    %5 = vector.load %arg6[%c0_4, %c0_5] : memref<16x1024xf32, #tpu.memory_space<vmem>>, vector<16x1024xf32>
    %c0_6 = arith.constant 0 : index
    %c0_7 = arith.constant 0 : index
    %6 = vector.load %arg7[%c0_6, %c0_7] : memref<16x1024xf32, #tpu.memory_space<vmem>>, vector<16x1024xf32>
    %c0_8 = arith.constant 0 : index
    %c0_9 = arith.constant 0 : index
    %7 = vector.load %arg3[%c0_8, %c0_9] : memref<16x1024xbf16, #tpu.memory_space<vmem>>, vector<16x1024xbf16>
    %8 = arith.extf %7 : vector<16x1024xbf16> to vector<16x1024xf32>
    %c0_10 = arith.constant 0 : index
    %c0_11 = arith.constant 0 : index
    %9 = vector.load %arg4[%c0_10, %c0_11] : memref<16x1024xbf16, #tpu.memory_space<vmem>>, vector<16x1024xbf16>
    %10 = arith.extf %9 : vector<16x1024xbf16> to vector<16x1024xf32>
    %c0_12 = arith.constant 0 : index
    %c0_13 = arith.constant 0 : index
    %11 = vector.load %arg8[%c0_12, %c0_13] : memref<16x1024xbf16, #tpu.memory_space<vmem>>, vector<16x1024xbf16>
    %12 = arith.extf %11 : vector<16x1024xbf16> to vector<16x1024xf32>
    %13 = arith.mulf %8, %10 : vector<16x1024xf32>
    %14 = arith.subf %10, %13 : vector<16x1024xf32>
    %cst = arith.constant 0.000000e+00 : f32
    %15 = vector.broadcast %cst : f32 to vector<16x1024xf32>
    %16 = arith.cmpf one, %8, %15 : vector<16x1024xf32>
    %cst_14 = arith.constant 1.000000e+00 : f32
    %17 = vector.broadcast %cst_14 : f32 to vector<16x1024xf32>
    %18 = arith.subf %17, %3 : vector<16x1024xf32>
    %19 = arith.select %16, %3, %18 : vector<16x1024xi1>, vector<16x1024xf32>
    %20 = math.log %19 : vector<16x1024xf32>
    %cst_15 = arith.constant -1.000000e+02 : f32
    %21 = vector.broadcast %cst_15 : f32 to vector<16x1024xf32>
    %22 = arith.maximumf %20, %21 : vector<16x1024xf32>
    %cst_16 = arith.constant 0.000000e+00 : f32
    %23 = vector.broadcast %cst_16 : f32 to vector<16x1024xf32>
    %24 = arith.subf %23, %22 : vector<16x1024xf32>
    %25 = arith.mulf %24, %14 : vector<16x1024xf32>
    %c0_17 = arith.constant 0 : index
    %c0_18 = arith.constant 0 : index
    %26 = vector.load %arg9[%c0_17, %c0_18] : memref<16x1024xf32, #tpu.memory_space<vmem>>, vector<16x1024xf32>
    tpu.vector_store %arg9[%c0_17, %c0_18], %25 {strides = array<i32>} : memref<16x1024xf32, #tpu.memory_space<vmem>>, vector<16x1024xf32>,
    %c0_19 = arith.constant 0 : index
    %c0_20 = arith.constant 0 : index
    %c0_21 = arith.constant 0 : index
    %27 = vector.load %arg11[%c0_19, %c0_20, %c0_21] : memref<7x16x1024xf32, #tpu.memory_space<vmem>>, vector<1x16x1024xf32>
    %28 = vector.shape_cast %27 : vector<1x16x1024xf32> to vector<16x1024xf32>
    %29 = arith.mulf %24, %13 : vector<16x1024xf32>
    %30 = arith.addf %28, %29 : vector<16x1024xf32>
    %c0_22 = arith.constant 0 : index
    %c0_23 = arith.constant 0 : index
    %c0_24 = arith.constant 0 : index
    %31 = vector.load %arg11[%c0_22, %c0_23, %c0_24] : memref<7x16x1024xf32, #tpu.memory_space<vmem>>, vector<1x16x1024xf32>
    %32 = vector.shape_cast %31 : vector<1x16x1024xf32> to vector<16x1024xf32>
    %33 = vector.shape_cast %30 : vector<16x1024xf32> to vector<1x16x1024xf32>
    tpu.vector_store %arg11[%c0_22, %c0_23, %c0_24], %33 {strides = array<i32>} : memref<7x16x1024xf32, #tpu.memory_space<vmem>>, vector<1x16x1024xf32>,
    %c1 = arith.constant 1 : index
    %c0_25 = arith.constant 0 : index
    %c0_26 = arith.constant 0 : index
    %34 = vector.load %arg11[%c1, %c0_25, %c0_26] : memref<7x16x1024xf32, #tpu.memory_space<vmem>>, vector<1x16x1024xf32>
    %35 = vector.shape_cast %34 : vector<1x16x1024xf32> to vector<16x1024xf32>
    %36 = arith.addf %35, %13 : vector<16x1024xf32>
    %c1_27 = arith.constant 1 : index
    %c0_28 = arith.constant 0 : index
    %c0_29 = arith.constant 0 : index
    %37 = vector.load %arg11[%c1_27, %c0_28, %c0_29] : memref<7x16x1024xf32, #tpu.memory_space<vmem>>, vector<1x16x1024xf32>
    %38 = vector.shape_cast %37 : vector<1x16x1024xf32> to vector<16x1024xf32>
    %39 = vector.shape_cast %36 : vector<16x1024xf32> to vector<1x16x1024xf32>
    tpu.vector_store %arg11[%c1_27, %c0_28, %c0_29], %39 {strides = array<i32>} : memref<7x16x1024xf32, #tpu.memory_space<vmem>>, vector<1x16x1024xf32>,
    %c2 = arith.constant 2 : index
    %c0_30 = arith.constant 0 : index
    %c0_31 = arith.constant 0 : index
    %40 = vector.load %arg11[%c2, %c0_30, %c0_31] : memref<7x16x1024xf32, #tpu.memory_space<vmem>>, vector<1x16x1024xf32>
    %41 = vector.shape_cast %40 : vector<1x16x1024xf32> to vector<16x1024xf32>
    %42 = arith.addf %41, %10 : vector<16x1024xf32>
    %c2_32 = arith.constant 2 : index
    %c0_33 = arith.constant 0 : index
    %c0_34 = arith.constant 0 : index
    %43 = vector.load %arg11[%c2_32, %c0_33, %c0_34] : memref<7x16x1024xf32, #tpu.memory_space<vmem>>, vector<1x16x1024xf32>
    %44 = vector.shape_cast %43 : vector<1x16x1024xf32> to vector<16x1024xf32>
    %45 = vector.shape_cast %42 : vector<16x1024xf32> to vector<1x16x1024xf32>
    tpu.vector_store %arg11[%c2_32, %c0_33, %c0_34], %45 {strides = array<i32>} : memref<7x16x1024xf32, #tpu.memory_space<vmem>>, vector<1x16x1024xf32>,
    %c3 = arith.constant 3 : index
    %c0_35 = arith.constant 0 : index
    %c0_36 = arith.constant 0 : index
    %46 = vector.load %arg11[%c3, %c0_35, %c0_36] : memref<7x16x1024xf32, #tpu.memory_space<vmem>>, vector<1x16x1024xf32>
    %47 = vector.shape_cast %46 : vector<1x16x1024xf32> to vector<16x1024xf32>
    %48 = arith.subf %5, %6 : vector<16x1024xf32>
    %49 = math.absf %48 : vector<16x1024xf32>
    %50 = arith.mulf %49, %12 : vector<16x1024xf32>
    %51 = arith.addf %47, %50 : vector<16x1024xf32>
    %c3_37 = arith.constant 3 : index
    %c0_38 = arith.constant 0 : index
    %c0_39 = arith.constant 0 : index
    %52 = vector.load %arg11[%c3_37, %c0_38, %c0_39] : memref<7x16x1024xf32, #tpu.memory_space<vmem>>, vector<1x16x1024xf32>
    %53 = vector.shape_cast %52 : vector<1x16x1024xf32> to vector<16x1024xf32>
    %54 = vector.shape_cast %51 : vector<16x1024xf32> to vector<1x16x1024xf32>
    tpu.vector_store %arg11[%c3_37, %c0_38, %c0_39], %54 {strides = array<i32>} : memref<7x16x1024xf32, #tpu.memory_space<vmem>>, vector<1x16x1024xf32>,
    %c4 = arith.constant 4 : index
    %c0_40 = arith.constant 0 : index
    %c0_41 = arith.constant 0 : index
    %55 = vector.load %arg11[%c4, %c0_40, %c0_41] : memref<7x16x1024xf32, #tpu.memory_space<vmem>>, vector<1x16x1024xf32>
    %56 = vector.shape_cast %55 : vector<1x16x1024xf32> to vector<16x1024xf32>
    %57 = arith.addf %56, %12 : vector<16x1024xf32>
    %c4_42 = arith.constant 4 : index
    %c0_43 = arith.constant 0 : index
    %c0_44 = arith.constant 0 : index
    %58 = vector.load %arg11[%c4_42, %c0_43, %c0_44] : memref<7x16x1024xf32, #tpu.memory_space<vmem>>, vector<1x16x1024xf32>
    %59 = vector.shape_cast %58 : vector<1x16x1024xf32> to vector<16x1024xf32>
    %60 = vector.shape_cast %57 : vector<16x1024xf32> to vector<1x16x1024xf32>
    tpu.vector_store %arg11[%c4_42, %c0_43, %c0_44], %60 {strides = array<i32>} : memref<7x16x1024xf32, #tpu.memory_space<vmem>>, vector<1x16x1024xf32>,
    %c5 = arith.constant 5 : index
    %c0_45 = arith.constant 0 : index
    %c0_46 = arith.constant 0 : index
    %61 = vector.load %arg11[%c5, %c0_45, %c0_46] : memref<7x16x1024xf32, #tpu.memory_space<vmem>>, vector<1x16x1024xf32>
    %62 = vector.shape_cast %61 : vector<1x16x1024xf32> to vector<16x1024xf32>
    %63 = arith.mulf %4, %13 : vector<16x1024xf32>
    %64 = arith.addf %62, %63 : vector<16x1024xf32>
    %c5_47 = arith.constant 5 : index
    %c0_48 = arith.constant 0 : index
    %c0_49 = arith.constant 0 : index
    %65 = vector.load %arg11[%c5_47, %c0_48, %c0_49] : memref<7x16x1024xf32, #tpu.memory_space<vmem>>, vector<1x16x1024xf32>
    %66 = vector.shape_cast %65 : vector<1x16x1024xf32> to vector<16x1024xf32>
    %67 = vector.shape_cast %64 : vector<16x1024xf32> to vector<1x16x1024xf32>
    tpu.vector_store %arg11[%c5_47, %c0_48, %c0_49], %67 {strides = array<i32>} : memref<7x16x1024xf32, #tpu.memory_space<vmem>>, vector<1x16x1024xf32>,
    %c6 = arith.constant 6 : index
    %c0_50 = arith.constant 0 : index
    %c0_51 = arith.constant 0 : index
    %68 = vector.load %arg11[%c6, %c0_50, %c0_51] : memref<7x16x1024xf32, #tpu.memory_space<vmem>>, vector<1x16x1024xf32>
    %69 = vector.shape_cast %68 : vector<1x16x1024xf32> to vector<16x1024xf32>
    %70 = arith.mulf %4, %10 : vector<16x1024xf32>
    %71 = arith.addf %69, %70 : vector<16x1024xf32>
    %c6_52 = arith.constant 6 : index
    %c0_53 = arith.constant 0 : index
    %c0_54 = arith.constant 0 : index
    %72 = vector.load %arg11[%c6_52, %c0_53, %c0_54] : memref<7x16x1024xf32, #tpu.memory_space<vmem>>, vector<1x16x1024xf32>
    %73 = vector.shape_cast %72 : vector<1x16x1024xf32> to vector<16x1024xf32>
    %74 = vector.shape_cast %71 : vector<16x1024xf32> to vector<1x16x1024xf32>
    tpu.vector_store %arg11[%c6_52, %c0_53, %c0_54], %74 {strides = array<i32>} : memref<7x16x1024xf32, #tpu.memory_space<vmem>>, vector<1x16x1024xf32>,
    %c0_i32_55 = arith.constant 0 : i32
    %75 = arith.cmpi eq, %arg1, %c0_i32_55 : i32
    %76 = arith.extui %75 : i1 to i32
    %c0_i32_56 = arith.constant 0 : i32
    %77 = arith.cmpi ne, %76, %c0_i32_56 : i32
    scf.if %77 {
      %78 = tpu.iota {dimensions = array<i32: 1>} : vector<1x8x128xi32>
      %cst_57 = arith.constant 0.000000e+00 : f32
      %79 = vector.broadcast %cst_57 : f32 to vector<1x8x128xf32>
      %c0_i32_58 = arith.constant 0 : i32
      %80 = vector.broadcast %c0_i32_58 : i32 to vector<1x8x128xi32>
      %81 = arith.cmpi eq, %78, %80 : vector<1x8x128xi32>
      %c0_59 = arith.constant 0 : index
      %c0_60 = arith.constant 0 : index
      %c0_61 = arith.constant 0 : index
      %82 = vector.load %arg11[%c0_59, %c0_60, %c0_61] : memref<7x16x1024xf32, #tpu.memory_space<vmem>>, vector<1x16x1024xf32>
      %83 = vector.shape_cast %82 : vector<1x16x1024xf32> to vector<16x1024xf32>
      %84 = vector.shape_cast %83 : vector<16x1024xf32> to vector<1x16x1024xf32>
      %cst_62 = arith.constant dense<0.000000e+00> : vector<1xf32>
      %85 = vector.multi_reduction <add>, %84, %cst_62 [1, 2] : vector<1x16x1024xf32> to vector<1xf32>
      %86 = vector.shape_cast %85 : vector<1xf32> to vector<1x1x1xf32>
      %87 = vector.extract %86[0, 0, 0] : f32 from vector<1x1x1xf32>
      %88 = vector.broadcast %87 : f32 to vector<1x8x128xf32>
      %89 = arith.select %81, %88, %79 : vector<1x8x128xi1>, vector<1x8x128xf32>
      %c1_i32 = arith.constant 1 : i32
      %90 = vector.broadcast %c1_i32 : i32 to vector<1x8x128xi32>
      %91 = arith.cmpi eq, %78, %90 : vector<1x8x128xi32>
      %c1_63 = arith.constant 1 : index
      %c0_64 = arith.constant 0 : index
      %c0_65 = arith.constant 0 : index
      %92 = vector.load %arg11[%c1_63, %c0_64, %c0_65] : memref<7x16x1024xf32, #tpu.memory_space<vmem>>, vector<1x16x1024xf32>
      %93 = vector.shape_cast %92 : vector<1x16x1024xf32> to vector<16x1024xf32>
      %94 = vector.shape_cast %93 : vector<16x1024xf32> to vector<1x16x1024xf32>
      %cst_66 = arith.constant dense<0.000000e+00> : vector<1xf32>
      %95 = vector.multi_reduction <add>, %94, %cst_66 [1, 2] : vector<1x16x1024xf32> to vector<1xf32>
      %96 = vector.shape_cast %95 : vector<1xf32> to vector<1x1x1xf32>
      %97 = vector.extract %96[0, 0, 0] : f32 from vector<1x1x1xf32>
      %98 = vector.broadcast %97 : f32 to vector<1x8x128xf32>
      %99 = arith.select %91, %98, %89 : vector<1x8x128xi1>, vector<1x8x128xf32>
      %c2_i32 = arith.constant 2 : i32
      %100 = vector.broadcast %c2_i32 : i32 to vector<1x8x128xi32>
      %101 = arith.cmpi eq, %78, %100 : vector<1x8x128xi32>
      %c2_67 = arith.constant 2 : index
      %c0_68 = arith.constant 0 : index
      %c0_69 = arith.constant 0 : index
      %102 = vector.load %arg11[%c2_67, %c0_68, %c0_69] : memref<7x16x1024xf32, #tpu.memory_space<vmem>>, vector<1x16x1024xf32>
      %103 = vector.shape_cast %102 : vector<1x16x1024xf32> to vector<16x1024xf32>
      %104 = vector.shape_cast %103 : vector<16x1024xf32> to vector<1x16x1024xf32>
      %cst_70 = arith.constant dense<0.000000e+00> : vector<1xf32>
      %105 = vector.multi_reduction <add>, %104, %cst_70 [1, 2] : vector<1x16x1024xf32> to vector<1xf32>
      %106 = vector.shape_cast %105 : vector<1xf32> to vector<1x1x1xf32>
      %107 = vector.extract %106[0, 0, 0] : f32 from vector<1x1x1xf32>
      %108 = vector.broadcast %107 : f32 to vector<1x8x128xf32>
      %109 = arith.select %101, %108, %99 : vector<1x8x128xi1>, vector<1x8x128xf32>
      %c3_i32 = arith.constant 3 : i32
      %110 = vector.broadcast %c3_i32 : i32 to vector<1x8x128xi32>
      %111 = arith.cmpi eq, %78, %110 : vector<1x8x128xi32>
      %c3_71 = arith.constant 3 : index
      %c0_72 = arith.constant 0 : index
      %c0_73 = arith.constant 0 : index
      %112 = vector.load %arg11[%c3_71, %c0_72, %c0_73] : memref<7x16x1024xf32, #tpu.memory_space<vmem>>, vector<1x16x1024xf32>
      %113 = vector.shape_cast %112 : vector<1x16x1024xf32> to vector<16x1024xf32>
      %114 = vector.shape_cast %113 : vector<16x1024xf32> to vector<1x16x1024xf32>
      %cst_74 = arith.constant dense<0.000000e+00> : vector<1xf32>
      %115 = vector.multi_reduction <add>, %114, %cst_74 [1, 2] : vector<1x16x1024xf32> to vector<1xf32>
      %116 = vector.shape_cast %115 : vector<1xf32> to vector<1x1x1xf32>
      %117 = vector.extract %116[0, 0, 0] : f32 from vector<1x1x1xf32>
      %118 = vector.broadcast %117 : f32 to vector<1x8x128xf32>
      %119 = arith.select %111, %118, %109 : vector<1x8x128xi1>, vector<1x8x128xf32>
      %c4_i32 = arith.constant 4 : i32
      %120 = vector.broadcast %c4_i32 : i32 to vector<1x8x128xi32>
      %121 = arith.cmpi eq, %78, %120 : vector<1x8x128xi32>
      %c4_75 = arith.constant 4 : index
      %c0_76 = arith.constant 0 : index
      %c0_77 = arith.constant 0 : index
      %122 = vector.load %arg11[%c4_75, %c0_76, %c0_77] : memref<7x16x1024xf32, #tpu.memory_space<vmem>>, vector<1x16x1024xf32>
      %123 = vector.shape_cast %122 : vector<1x16x1024xf32> to vector<16x1024xf32>
      %124 = vector.shape_cast %123 : vector<16x1024xf32> to vector<1x16x1024xf32>
      %cst_78 = arith.constant dense<0.000000e+00> : vector<1xf32>
      %125 = vector.multi_reduction <add>, %124, %cst_78 [1, 2] : vector<1x16x1024xf32> to vector<1xf32>
      %126 = vector.shape_cast %125 : vector<1xf32> to vector<1x1x1xf32>
      %127 = vector.extract %126[0, 0, 0] : f32 from vector<1x1x1xf32>
      %128 = vector.broadcast %127 : f32 to vector<1x8x128xf32>
      %129 = arith.select %121, %128, %119 : vector<1x8x128xi1>, vector<1x8x128xf32>
      %c5_i32 = arith.constant 5 : i32
      %130 = vector.broadcast %c5_i32 : i32 to vector<1x8x128xi32>
      %131 = arith.cmpi eq, %78, %130 : vector<1x8x128xi32>
      %c5_79 = arith.constant 5 : index
      %c0_80 = arith.constant 0 : index
      %c0_81 = arith.constant 0 : index
      %132 = vector.load %arg11[%c5_79, %c0_80, %c0_81] : memref<7x16x1024xf32, #tpu.memory_space<vmem>>, vector<1x16x1024xf32>
      %133 = vector.shape_cast %132 : vector<1x16x1024xf32> to vector<16x1024xf32>
      %134 = vector.shape_cast %133 : vector<16x1024xf32> to vector<1x16x1024xf32>
      %cst_82 = arith.constant dense<0.000000e+00> : vector<1xf32>
      %135 = vector.multi_reduction <add>, %134, %cst_82 [1, 2] : vector<1x16x1024xf32> to vector<1xf32>
      %136 = vector.shape_cast %135 : vector<1xf32> to vector<1x1x1xf32>
      %137 = vector.extract %136[0, 0, 0] : f32 from vector<1x1x1xf32>
      %138 = vector.broadcast %137 : f32 to vector<1x8x128xf32>
      %139 = arith.select %131, %138, %129 : vector<1x8x128xi1>, vector<1x8x128xf32>
      %c6_i32 = arith.constant 6 : i32
      %140 = vector.broadcast %c6_i32 : i32 to vector<1x8x128xi32>
      %141 = arith.cmpi eq, %78, %140 : vector<1x8x128xi32>
      %c6_83 = arith.constant 6 : index
      %c0_84 = arith.constant 0 : index
      %c0_85 = arith.constant 0 : index
      %142 = vector.load %arg11[%c6_83, %c0_84, %c0_85] : memref<7x16x1024xf32, #tpu.memory_space<vmem>>, vector<1x16x1024xf32>
      %143 = vector.shape_cast %142 : vector<1x16x1024xf32> to vector<16x1024xf32>
      %144 = vector.shape_cast %143 : vector<16x1024xf32> to vector<1x16x1024xf32>
      %cst_86 = arith.constant dense<0.000000e+00> : vector<1xf32>
      %145 = vector.multi_reduction <add>, %144, %cst_86 [1, 2] : vector<1x16x1024xf32> to vector<1xf32>
      %146 = vector.shape_cast %145 : vector<1xf32> to vector<1x1x1xf32>
      %147 = vector.extract %146[0, 0, 0] : f32 from vector<1x1x1xf32>
      %148 = vector.broadcast %147 : f32 to vector<1x8x128xf32>
      %149 = arith.select %141, %148, %139 : vector<1x8x128xi1>, vector<1x8x128xf32>
      %c0_87 = arith.constant 0 : index
      %c0_88 = arith.constant 0 : index
      %c0_89 = arith.constant 0 : index
      %150 = vector.load %arg10[%c0_87, %c0_88, %c0_89] : memref<1x8x128xf32, #tpu.memory_space<vmem>>, vector<1x8x128xf32>
      tpu.vector_store %arg10[%c0_87, %c0_88, %c0_89], %149 {strides = array<i32>} : memref<1x8x128xf32, #tpu.memory_space<vmem>>, vector<1x8x128xf32>,
    } else {
    }
    return
  }
  func.func @transform_0(%arg0: i32, %arg1: i32) -> (i32, i32) {
    %c1_i32 = arith.constant 1 : i32
    %0 = arith.muli %arg0, %c1_i32 : i32
    %1 = arith.addi %0, %arg1 : i32
    %c0_i32 = arith.constant 0 : i32
    %c0_i32_0 = arith.constant 0 : i32
    return %1, %c0_i32 : i32, i32
  }
  func.func @transform_1(%arg0: i32, %arg1: i32) -> (i32, i32) {
    %c1_i32 = arith.constant 1 : i32
    %0 = arith.muli %arg0, %c1_i32 : i32
    %1 = arith.addi %0, %arg1 : i32
    %c0_i32 = arith.constant 0 : i32
    %c0_i32_0 = arith.constant 0 : i32
    return %1, %c0_i32 : i32, i32
  }
  func.func @transform_2(%arg0: i32, %arg1: i32) -> (i32, i32) {
    %c1_i32 = arith.constant 1 : i32
    %0 = arith.muli %arg0, %c1_i32 : i32
    %1 = arith.addi %0, %arg1 : i32
    %c0_i32 = arith.constant 0 : i32
    %c0_i32_0 = arith.constant 0 : i32
    return %1, %c0_i32 : i32, i32
  }
  func.func @transform_3(%arg0: i32, %arg1: i32) -> (i32, i32) {
    %c1_i32 = arith.constant 1 : i32
    %0 = arith.muli %arg0, %c1_i32 : i32
    %1 = arith.addi %0, %arg1 : i32
    %c0_i32 = arith.constant 0 : i32
    %c0_i32_0 = arith.constant 0 : i32
    return %1, %c0_i32 : i32, i32
  }
  func.func @transform_4(%arg0: i32, %arg1: i32) -> (i32, i32) {
    %c1_i32 = arith.constant 1 : i32
    %0 = arith.muli %arg0, %c1_i32 : i32
    %1 = arith.addi %0, %arg1 : i32
    %c0_i32 = arith.constant 0 : i32
    %c0_i32_0 = arith.constant 0 : i32
    return %1, %c0_i32 : i32, i32
  }
  func.func @transform_5(%arg0: i32, %arg1: i32) -> (i32, i32) {
    %c1_i32 = arith.constant 1 : i32
    %0 = arith.muli %arg0, %c1_i32 : i32
    %1 = arith.addi %0, %arg1 : i32
    %c0_i32 = arith.constant 0 : i32
    %c0_i32_0 = arith.constant 0 : i32
    return %1, %c0_i32 : i32, i32
  }
  func.func @transform_6(%arg0: i32, %arg1: i32) -> (i32, i32) {
    %c1_i32 = arith.constant 1 : i32
    %0 = arith.muli %arg0, %c1_i32 : i32
    %1 = arith.addi %0, %arg1 : i32
    %c0_i32 = arith.constant 0 : i32
    %c0_i32_0 = arith.constant 0 : i32
    return %1, %c0_i32 : i32, i32
  }
  func.func @transform_7(%arg0: i32, %arg1: i32) -> (i32, i32) {
    %c1_i32 = arith.constant 1 : i32
    %0 = arith.muli %arg0, %c1_i32 : i32
    %1 = arith.addi %0, %arg1 : i32
    %c0_i32 = arith.constant 0 : i32
    %c0_i32_0 = arith.constant 0 : i32
    return %1, %c0_i32 : i32, i32
  }
  func.func @transform_8(%arg0: i32, %arg1: i32) -> (i32, i32, i32) {
    %c0_i32 = arith.constant 0 : i32
    %c0_i32_0 = arith.constant 0 : i32
    %c0_i32_1 = arith.constant 0 : i32
    return %arg0, %c0_i32, %c0_i32_0 : i32, i32, i32
  }
}

</mosaic_0001>

<llo_original>
// kernel: tpu_custom_call.1
$region0: #{tpu_custom_call.1}
  #allocation0 [shape = 'u32[]', space=smem, size = 0x4, offset = 0x4, fixed_abs, tag = 'smem constant byte address 0x4 - core index']
  #allocation1 [shape = 'u32[72,128]{1,0:T(1,128)}', space=vmem, size = 0x9000, scoped, tag = 'internal scratch']
  #allocation2 [shape = 'f32[7,16,1024]{2,1,0:T(8,128)}', space=vmem, size = 0x70000, scoped, tag = 'scratch operand']
  %s0 = inlined_call_operand.hbm [shape: f32[32,1024], index: 0, kind: input, shape index: {}]
  %s1 = inlined_call_operand.hbm [shape: bf16[32,1024], index: 1, kind: input, shape index: {}]
  %s2 = inlined_call_operand.hbm [shape: bf16[32,1024], index: 2, kind: input, shape index: {}]
  %s3 = inlined_call_operand.hbm [shape: f32[32,1024], index: 3, kind: input, shape index: {}]
  %s4 = inlined_call_operand.hbm [shape: f32[32,1024], index: 4, kind: input, shape index: {}]
  %s5 = inlined_call_operand.hbm [shape: f32[32,1024], index: 5, kind: input, shape index: {}]
  %s6 = inlined_call_operand.hbm [shape: bf16[32,1024], index: 6, kind: input, shape index: {}]
  %s7 = inlined_call_operand.hbm [shape: f32[32,1024], index: 7, kind: output, shape index: {0}]
  %s8 = inlined_call_operand.hbm [shape: f32[2,8,128], index: 8, kind: output, shape index: {1}]
  %9 = xla_tuple %s7, %s8
  %s10 = sld [smem:[#allocation0]]
  $region105: #{tpu_custom_call.1} parent=0
    _
  %s12 = ssub.s32 1, %s10
  %s13 = scalar_select 0, %s12, %s10
  $region1: #{tpu_custom_call.1} parent=0
    #allocation3 [shape = 'u8[131072]{0}', space=vmem, size = 0x20000, scoped, tag = 'input window, operand 0']
    #allocation4 [shape = 's32[2]{0}', space=sflag, size = 0x8, scoped, tag = 'scoped memory for tpu_custom_call.1']
    #allocation5 [shape = 's32[2]{0}', space=sflag, size = 0x8, scoped, tag = 'scoped memory for tpu_custom_call.1']
    #allocation6 [shape = 'u8[65536]{0}', space=vmem, size = 0x10000, scoped, tag = 'input window, operand 1']
    #allocation7 [shape = 's32[2]{0}', space=sflag, size = 0x8, scoped, tag = 'scoped memory for tpu_custom_call.1']
    #allocation8 [shape = 'u8[65536]{0}', space=vmem, size = 0x10000, scoped, tag = 'input window, operand 2']
    #allocation9 [shape = 'u8[131072]{0}', space=vmem, size = 0x20000, scoped, tag = 'input window, operand 3']
    #allocation10 [shape = 's32[2]{0}', space=sflag, size = 0x8, scoped, tag = 'scoped memory for tpu_custom_call.1']
    #allocation11 [shape = 'u8[131072]{0}', space=vmem, size = 0x20000, scoped, tag = 'input window, operand 4']
    #allocation12 [shape = 'u8[131072]{0}', space=vmem, size = 0x20000, scoped, tag = 'input window, operand 5']
    #allocation13 [shape = 's32[2]{0}', space=sflag, size = 0x8, scoped, tag = 'scoped memory for tpu_custom_call.1']
    #allocation14 [shape = 'u8[65536]{0}', space=vmem, size = 0x10000, scoped, tag = 'input window, operand 6']
    #allocation15 [shape = 'u8[131072]{0}', space=vmem, size = 0x20000, scoped, tag = 'output window, operand 0']
    #allocation16 [shape = 'u8[8192]{0}', space=vmem, size = 0x2000, scoped, tag = 'output window, operand 1']
    #allocation17 [shape = 's32[2]{0}', space=sflag, size = 0x8, scoped, tag = 'scoped memory for tpu_custom_call.1']
    %14 = vsyncpa [#allocation4], 0
    %s15 = scalar_lea.sflag [#allocation4], 1
    %16 = vsyncpa %s15, 0
    %17 = vsyncpa [#allocation7], 0
    %s18 = scalar_lea.sflag [#allocation7], 1
    %19 = vsyncpa %s18, 0
    %20 = vsyncpa [#allocation10], 0
    %s21 = scalar_lea.sflag [#allocation10], 1
    %22 = vsyncpa %s21, 0
    %23 = vsyncpa [#allocation13], 0
    %s24 = scalar_lea.sflag [#allocation13], 1
    %25 = vsyncpa %s24, 0
    %26 = vsyncpa [#allocation5], 0
    %s27 = scalar_lea.sflag [#allocation5], 1
    %28 = vsyncpa %s27, 0
    %29 = vsyncpa [#allocation17], 0
    %s30 = scalar_lea.sflag [#allocation17], 1
    %31 = vsyncpa %s30, 0
    loop: start=0, step=1, limit=4
    $region2: #{tpu_custom_call.1} parent=1 // loop_pre_header
      _
    $region3: #{tpu_custom_call.1} parent=1 // loop_header
      %s33 = sphi 0, %s37
      %p34 = scmp.ge.s32.totalorder %s33, 4
      %s40 = sphi 0, %s52
      %s41 = sphi 0, %s48
      %s42 = sphi 0, %s40
      %s43 = sphi 0, %s41
      %s44 = sphi 0, %s42
      %s45 = sphi 0, %s43
      %s57 = sphi 0, %s59
      %s60 = sphi 0, %s57
      %s61 = sphi 0, %s60
      %s77 = sphi 0, %s61
      %s85 = sphi 0, %s87
      %s88 = sphi 0, %s85
      %s89 = sphi 0, %s88
      %s105 = sphi 0, %s89
      %s113 = sphi 0, %s115
      %s116 = sphi 0, %s113
      %s117 = sphi 0, %s116
      %s133 = sphi 0, %s117
      %s141 = sphi 0, %s143
      %s144 = sphi 0, %s141
      %s145 = sphi 0, %s144
      %s161 = sphi 0, %s145
      %s169 = sphi 0, %s171
      %s172 = sphi 0, %s169
      %s173 = sphi 0, %s172
      %s189 = sphi 0, %s173
      %s197 = sphi 0, %s199
      %s200 = sphi 0, %s197
      %s201 = sphi 0, %s200
      %s217 = sphi 0, %s201
      %s225 = sphi 0, %s227
      %s228 = sphi 0, %s225
      %s229 = sphi 0, %s228
      %s245 = sphi 0, %s229
      %s253 = sphi 0, %s255
      %s256 = sphi 0, %s253
      %s257 = sphi 0, %s256
      %s273 = sphi 0, %s257
      %s279 = sphi 0, %s281
      %s282 = sphi 0, %s279
      %s283 = sphi 0, %s282
      %s299 = sphi 0, %s283
    $region4: #{tpu_custom_call.1} parent=1 // loop_header_branch
      %36 = sbr.rel (%p34) target = $region8
    $region5: #{tpu_custom_call.1} parent=1 // loop_body
      %s38 = ssub.s32 %s33, 1
      %s39 = ssub.s32 %s33, 2
      %s46 = sadd.s32 1, %s41
      %p47 = scmp.ge.s32.totalorder %s46, 1
      %s48 = scalar_select %p47, 0, %s46
      %s49 = sadd.s32 1, %s40
      %s50 = scalar_select %p47, %s49, %s40
      %p51 = scmp.ge.s32.totalorder %s50, 2
      %s52 = scalar_select %p51, 0, %s50
      %s53 = sadd.s32 %s40, %s41
      %s54 = sadd.s32 %s52, %s48
      %s55 = ssub.s32 %s53, %s54
      %p56 = scmp.eq.s32.totalorder %s55, 0
      %s58 = sadd.s32 %s57, 1
      %s59 = scalar_select %p56, %s57, %s58
      %p62 = pneg %p56
      %p63 = scmp.eq.s32.totalorder %s33, 1
      %p64 = por %p62, %p63
      %p65 = scmp.ne.s32.totalorder %s57, %s60
      %p66 = scmp.eq.s32.totalorder %s33, 0
      %p67 = por %p65, %p66
      %p68 = scmp.ne.s32.totalorder %s57, %s60
      %p69 = scmp.eq.s32.totalorder %s38, 1
      %p70 = por %p68, %p69
      %p71 = scmp.ne.s32.totalorder %s60, %s61
      %p72 = scmp.eq.s32.totalorder %s38, 0
      %p73 = por %p71, %p72
      %p74 = scmp.ne.s32.totalorder %s60, %s61
      %p75 = scmp.eq.s32.totalorder %s39, 1
      %p76 = por %p74, %p75
      %p78 = scmp.ne.s32.totalorder %s61, %s77
      %p79 = scmp.eq.s32.totalorder %s39, 0
      %p80 = por %p78, %p79
      %s81 = sadd.s32 %s40, %s41
      %s82 = sadd.s32 %s52, %s48
      %s83 = ssub.s32 %s81, %s82
      %p84 = scmp.eq.s32.totalorder %s83, 0
      %s86 = sadd.s32 %s85, 1
      %s87 = scalar_select %p84, %s85, %s86
      %p90 = pneg %p84
      %p91 = scmp.eq.s32.totalorder %s33, 1
      %p92 = por %p90, %p91
      %p93 = scmp.ne.s32.totalorder %s85, %s88
      %p94 = scmp.eq.s32.totalorder %s33, 0
      %p95 = por %p93, %p94
      %p96 = scmp.ne.s32.totalorder %s85, %s88
      %p97 = scmp.eq.s32.totalorder %s38, 1
      %p98 = por %p96, %p97
      %p99 = scmp.ne.s32.totalorder %s88, %s89
      %p100 = scmp.eq.s32.totalorder %s38, 0
      %p101 = por %p99, %p100
      %p102 = scmp.ne.s32.totalorder %s88, %s89
      %p103 = scmp.eq.s32.totalorder %s39, 1
      %p104 = por %p102, %p103
      %p106 = scmp.ne.s32.totalorder %s89, %s105
      %p107 = scmp.eq.s32.totalorder %s39, 0
      %p108 = por %p106, %p107
      %s109 = sadd.s32 %s40, %s41
      %s110 = sadd.s32 %s52, %s48
      %s111 = ssub.s32 %s109, %s110
      %p112 = scmp.eq.s32.totalorder %s111, 0
      %s114 = sadd.s32 %s113, 1
      %s115 = scalar_select %p112, %s113, %s114
      %p118 = pneg %p112
      %p119 = scmp.eq.s32.totalorder %s33, 1
      %p120 = por %p118, %p119
      %p121 = scmp.ne.s32.totalorder %s113, %s116
      %p122 = scmp.eq.s32.totalorder %s33, 0
      %p123 = por %p121, %p122
      %p124 = scmp.ne.s32.totalorder %s113, %s116
      %p125 = scmp.eq.s32.totalorder %s38, 1
      %p126 = por %p124, %p125
      %p127 = scmp.ne.s32.totalorder %s116, %s117
      %p128 = scmp.eq.s32.totalorder %s38, 0
      %p129 = por %p127, %p128
      %p130 = scmp.ne.s32.totalorder %s116, %s117
      %p131 = scmp.eq.s32.totalorder %s39, 1
      %p132 = por %p130, %p131
      %p134 = scmp.ne.s32.totalorder %s117, %s133
      %p135 = scmp.eq.s32.totalorder %s39, 0
      %p136 = por %p134, %p135
      %s137 = sadd.s32 %s40, %s41
      %s138 = sadd.s32 %s52, %s48
      %s139 = ssub.s32 %s137, %s138
      %p140 = scmp.eq.s32.totalorder %s139, 0
      %s142 = sadd.s32 %s141, 1
      %s143 = scalar_select %p140, %s141, %s142
      %p146 = pneg %p140
      %p147 = scmp.eq.s32.totalorder %s33, 1
      %p148 = por %p146, %p147
      %p149 = scmp.ne.s32.totalorder %s141, %s144
      %p150 = scmp.eq.s32.totalorder %s33, 0
      %p151 = por %p149, %p150
      %p152 = scmp.ne.s32.totalorder %s141, %s144
      %p153 = scmp.eq.s32.totalorder %s38, 1
      %p154 = por %p152, %p153
      %p155 = scmp.ne.s32.totalorder %s144, %s145
      %p156 = scmp.eq.s32.totalorder %s38, 0
      %p157 = por %p155, %p156
      %p158 = scmp.ne.s32.totalorder %s144, %s145
      %p159 = scmp.eq.s32.totalorder %s39, 1
      %p160 = por %p158, %p159
      %p162 = scmp.ne.s32.totalorder %s145, %s161
      %p163 = scmp.eq.s32.totalorder %s39, 0
      %p164 = por %p162, %p163
      %s165 = sadd.s32 %s40, %s41
      %s166 = sadd.s32 %s52, %s48
      %s167 = ssub.s32 %s165, %s166
      %p168 = scmp.eq.s32.totalorder %s167, 0
      %s170 = sadd.s32 %s169, 1
      %s171 = scalar_select %p168, %s169, %s170
      %p174 = pneg %p168
      %p175 = scmp.eq.s32.totalorder %s33, 1
      %p176 = por %p174, %p175
      %p177 = scmp.ne.s32.totalorder %s169, %s172
      %p178 = scmp.eq.s32.totalorder %s33, 0
      %p179 = por %p177, %p178
      %p180 = scmp.ne.s32.totalorder %s169, %s172
      %p181 = scmp.eq.s32.totalorder %s38, 1
      %p182 = por %p180, %p181
      %p183 = scmp.ne.s32.totalorder %s172, %s173
      %p184 = scmp.eq.s32.totalorder %s38, 0
      %p185 = por %p183, %p184
      %p186 = scmp.ne.s32.totalorder %s172, %s173
      %p187 = scmp.eq.s32.totalorder %s39, 1
      %p188 = por %p186, %p187
      %p190 = scmp.ne.s32.totalorder %s173, %s189
      %p191 = scmp.eq.s32.totalorder %s39, 0
      %p192 = por %p190, %p191
      %s193 = sadd.s32 %s40, %s41
      %s194 = sadd.s32 %s52, %s48
      %s195 = ssub.s32 %s193, %s194
      %p196 = scmp.eq.s32.totalorder %s195, 0
      %s198 = sadd.s32 %s197, 1
      %s199 = scalar_select %p196, %s197, %s198
      %p202 = pneg %p196
      %p203 = scmp.eq.s32.totalorder %s33, 1
      %p204 = por %p202, %p203
      %p205 = scmp.ne.s32.totalorder %s197, %s200
      %p206 = scmp.eq.s32.totalorder %s33, 0
      %p207 = por %p205, %p206
      %p208 = scmp.ne.s32.totalorder %s197, %s200
      %p209 = scmp.eq.s32.totalorder %s38, 1
      %p210 = por %p208, %p209
      %p211 = scmp.ne.s32.totalorder %s200, %s201
      %p212 = scmp.eq.s32.totalorder %s38, 0
      %p213 = por %p211, %p212
      %p214 = scmp.ne.s32.totalorder %s200, %s201
      %p215 = scmp.eq.s32.totalorder %s39, 1
      %p216 = por %p214, %p215
      %p218 = scmp.ne.s32.totalorder %s201, %s217
      %p219 = scmp.eq.s32.totalorder %s39, 0
      %p220 = por %p218, %p219
      %s221 = sadd.s32 %s40, %s41
      %s222 = sadd.s32 %s52, %s48
      %s223 = ssub.s32 %s221, %s222
      %p224 = scmp.eq.s32.totalorder %s223, 0
      %s226 = sadd.s32 %s225, 1
      %s227 = scalar_select %p224, %s225, %s226
      %p230 = pneg %p224
      %p231 = scmp.eq.s32.totalorder %s33, 1
      %p232 = por %p230, %p231
      %p233 = scmp.ne.s32.totalorder %s225, %s228
      %p234 = scmp.eq.s32.totalorder %s33, 0
      %p235 = por %p233, %p234
      %p236 = scmp.ne.s32.totalorder %s225, %s228
      %p237 = scmp.eq.s32.totalorder %s38, 1
      %p238 = por %p236, %p237
      %p239 = scmp.ne.s32.totalorder %s228, %s229
      %p240 = scmp.eq.s32.totalorder %s38, 0
      %p241 = por %p239, %p240
      %p242 = scmp.ne.s32.totalorder %s228, %s229
      %p243 = scmp.eq.s32.totalorder %s39, 1
      %p244 = por %p242, %p243
      %p246 = scmp.ne.s32.totalorder %s229, %s245
      %p247 = scmp.eq.s32.totalorder %s39, 0
      %p248 = por %p246, %p247
      %s249 = sadd.s32 %s40, %s41
      %s250 = sadd.s32 %s52, %s48
      %s251 = ssub.s32 %s249, %s250
      %p252 = scmp.eq.s32.totalorder %s251, 0
      %s254 = sadd.s32 %s253, 1
      %s255 = scalar_select %p252, %s253, %s254
      %p258 = pneg %p252
      %p259 = scmp.eq.s32.totalorder %s33, 1
      %p260 = por %p258, %p259
      %p261 = scmp.ne.s32.totalorder %s253, %s256
      %p262 = scmp.eq.s32.totalorder %s33, 0
      %p263 = por %p261, %p262
      %p264 = scmp.ne.s32.totalorder %s253, %s256
      %p265 = scmp.eq.s32.totalorder %s38, 1
      %p266 = por %p264, %p265
      %p267 = scmp.ne.s32.totalorder %s256, %s257
      %p268 = scmp.eq.s32.totalorder %s38, 0
      %p269 = por %p267, %p268
      %p270 = scmp.ne.s32.totalorder %s256, %s257
      %p271 = scmp.eq.s32.totalorder %s39, 1
      %p272 = por %p270, %p271
      %p274 = scmp.ne.s32.totalorder %s257, %s273
      %p275 = scmp.eq.s32.totalorder %s39, 0
      %p276 = por %p274, %p275
      %s277 = ssub.s32 %s40, %s52
      %p278 = scmp.eq.s32.totalorder %s277, 0
      %s280 = sadd.s32 %s279, 1
      %s281 = scalar_select %p278, %s279, %s280
      %p284 = pneg %p278
      %p285 = scmp.eq.s32.totalorder %s33, 1
      %p286 = por %p284, %p285
      %p287 = scmp.ne.s32.totalorder %s279, %s282
      %p288 = scmp.eq.s32.totalorder %s33, 0
      %p289 = por %p287, %p288
      %p290 = scmp.ne.s32.totalorder %s279, %s282
      %p291 = scmp.eq.s32.totalorder %s38, 1
      %p292 = por %p290, %p291
      %p293 = scmp.ne.s32.totalorder %s282, %s283
      %p294 = scmp.eq.s32.totalorder %s38, 0
      %p295 = por %p293, %p294
      %p296 = scmp.ne.s32.totalorder %s282, %s283
      %p297 = scmp.eq.s32.totalorder %s39, 1
      %p298 = por %p296, %p297
      %p300 = scmp.ne.s32.totalorder %s283, %s299
      %p301 = scmp.eq.s32.totalorder %s39, 0
      %p302 = por %p300, %p301
      %p303 = scmp.le.s32.totalorder 1, %s33
      %p304 = scmp.lt.s32.totalorder %s33, 3
      %p305 = pnand %p303, %p304
      %p306 = pneg %p305
      // Predicated region
      $region9: #{tpu_custom_call.1} parent=5 // pred_check
        _
      $region10: #{tpu_custom_call.1} parent=5 // pred_check_branch
        %308 = sbr.rel (%p305) target = $region12
      $region11: #{tpu_custom_call.1} parent=5 // pred_region
        %s309 = ssub.s32 %s33, 1
      $region12: #{tpu_custom_call.1} parent=5 // pred_fallthru
        _
      %p310 = scmp.lt.s32.totalorder %s33, 2
      // Predicated region
      $region13: #{tpu_custom_call.1} parent=5 // pred_check
        %p311 = pneg %p310
      $region14: #{tpu_custom_call.1} parent=5 // pred_check_branch
        %313 = sbr.rel (%p311) target = $region16
      $region15: #{tpu_custom_call.1} parent=5 // pred_region
        // Predicated region
        $region17: #{tpu_custom_call.1} parent=15 // pred_check
          %p314 = pneg %p67
        $region18: #{tpu_custom_call.1} parent=15 // pred_check_branch
          %316 = sbr.rel (%p314) target = $region20
        $region19: #{tpu_custom_call.1} parent=15 // pred_region
          %s317 = sand.u32 %s57, 1
          %s318 = scalar_lea.sflag [#allocation4], %s317
          %s319 = sand.u32 %s57, 1
          %s320 = smul.addr %s319, 128
          %s321 = scalar_lea.vmem [#allocation3], %s320
          %s322 = sadd.s32 %s40, %s41
          %s323 = smul.u32 2, %s322
          %325 = vsyncadd %s318, 0
          %s326 = smul.addr %s323, 8
          %s327 = smul.addr %s326, 8
          %s328 = scalar_lea.hbm %s0, %s327
          %s329 = sshll.u32 %s328, 4
          %s330 = int_to_ptr.hbm [resolvable:$true] %s329
          %s331 = sshll.u32 %s321, 4
          %s332 = int_to_ptr.vmem [resolvable:$true] %s331
          %337 = dma.hbm_to_vmem [thread:$0]  %s330, 2048, %s332, %s318, 1024, 1024, 64
        $region20: #{tpu_custom_call.1} parent=15 // pred_fallthru
          _
        // Predicated region
        $region21: #{tpu_custom_call.1} parent=15 // pred_check
          %p338 = pneg %p95
        $region22: #{tpu_custom_call.1} parent=15 // pred_check_branch
          %340 = sbr.rel (%p338) target = $region24
        $region23: #{tpu_custom_call.1} parent=15 // pred_region
          %s341 = sand.u32 %s33, 1
          %s342 = scalar_lea.sflag [#allocation7], %s341
          %s343 = sand.u32 %s85, 1
          %s344 = smul.addr %s343, 64
          %s345 = scalar_lea.vmem [#allocation6], %s344
          %s346 = sadd.s32 %s40, %s41
          %s347 = smul.u32 2, %s346
          %349 = vsyncadd %s342, 0
          %s350 = smul.addr %s347, 8
          %s351 = smul.addr %s350, 4
          %s352 = scalar_lea.hbm %s1, %s351
          %s353 = sshll.u32 %s352, 4
          %s354 = int_to_ptr.hbm [resolvable:$true] %s353
          %s355 = sshll.u32 %s345, 4
          %s356 = int_to_ptr.vmem [resolvable:$true] %s355
          %361 = dma.hbm_to_vmem [thread:$0]  %s354, 1024, %s356, %s342, 512, 512, 32
        $region24: #{tpu_custom_call.1} parent=15 // pred_fallthru
          _
        // Predicated region
        $region25: #{tpu_custom_call.1} parent=15 // pred_check
          %p362 = pneg %p123
        $region26: #{tpu_custom_call.1} parent=15 // pred_check_branch
          %364 = sbr.rel (%p362) target = $region28
        $region27: #{tpu_custom_call.1} parent=15 // pred_region
          %s365 = sand.u32 %s33, 1
          %s366 = scalar_lea.sflag [#allocation7], %s365
          %s367 = sand.u32 %s113, 1
          %s368 = smul.addr %s367, 64
          %s369 = scalar_lea.vmem [#allocation8], %s368
          %s370 = sadd.s32 %s40, %s41
          %s371 = smul.u32 2, %s370
          %373 = vsyncadd %s366, 0
          %s374 = smul.addr %s371, 8
          %s375 = smul.addr %s374, 4
          %s376 = scalar_lea.hbm %s2, %s375
          %s377 = sshll.u32 %s376, 4
          %s378 = int_to_ptr.hbm [resolvable:$true] %s377
          %s379 = sshll.u32 %s369, 4
          %s380 = int_to_ptr.vmem [resolvable:$true] %s379
          %385 = dma.hbm_to_vmem [thread:$0]  %s378, 1024, %s380, %s366, 512, 512, 32
        $region28: #{tpu_custom_call.1} parent=15 // pred_fallthru
          _
        // Predicated region
        $region29: #{tpu_custom_call.1} parent=15 // pred_check
          %p386 = pneg %p151
        $region30: #{tpu_custom_call.1} parent=15 // pred_check_branch
          %388 = sbr.rel (%p386) target = $region32
        $region31: #{tpu_custom_call.1} parent=15 // pred_region
          %s389 = sand.u32 %s33, 1
          %s390 = scalar_lea.sflag [#allocation10], %s389
          %s391 = sand.u32 %s141, 1
          %s392 = smul.addr %s391, 128
          %s393 = scalar_lea.vmem [#allocation9], %s392
          %s394 = sadd.s32 %s40, %s41
          %s395 = smul.u32 2, %s394
          %397 = vsyncadd %s390, 0
          %s398 = smul.addr %s395, 8
          %s399 = smul.addr %s398, 8
          %s400 = scalar_lea.hbm %s3, %s399
          %s401 = sshll.u32 %s400, 4
          %s402 = int_to_ptr.hbm [resolvable:$true] %s401
          %s403 = sshll.u32 %s393, 4
          %s404 = int_to_ptr.vmem [resolvable:$true] %s403
          %409 = dma.hbm_to_vmem [thread:$0]  %s402, 2048, %s404, %s390, 1024, 1024, 64
        $region32: #{tpu_custom_call.1} parent=15 // pred_fallthru
          _
        // Predicated region
        $region33: #{tpu_custom_call.1} parent=15 // pred_check
          %p410 = pneg %p179
        $region34: #{tpu_custom_call.1} parent=15 // pred_check_branch
          %412 = sbr.rel (%p410) target = $region36
        $region35: #{tpu_custom_call.1} parent=15 // pred_region
          %s413 = sand.u32 %s33, 1
          %s414 = scalar_lea.sflag [#allocation10], %s413
          %s415 = sand.u32 %s169, 1
          %s416 = smul.addr %s415, 128
          %s417 = scalar_lea.vmem [#allocation11], %s416
          %s418 = sadd.s32 %s40, %s41
          %s419 = smul.u32 2, %s418
          %421 = vsyncadd %s414, 0
          %s422 = smul.addr %s419, 8
          %s423 = smul.addr %s422, 8
          %s424 = scalar_lea.hbm %s4, %s423
          %s425 = sshll.u32 %s424, 4
          %s426 = int_to_ptr.hbm [resolvable:$true] %s425
          %s427 = sshll.u32 %s417, 4
          %s428 = int_to_ptr.vmem [resolvable:$true] %s427
          %433 = dma.hbm_to_vmem [thread:$0]  %s426, 2048, %s428, %s414, 1024, 1024, 64
        $region36: #{tpu_custom_call.1} parent=15 // pred_fallthru
          _
        // Predicated region
        $region37: #{tpu_custom_call.1} parent=15 // pred_check
          %p434 = pneg %p207
        $region38: #{tpu_custom_call.1} parent=15 // pred_check_branch
          %436 = sbr.rel (%p434) target = $region40
        $region39: #{tpu_custom_call.1} parent=15 // pred_region
          %s437 = sand.u32 %s33, 1
          %s438 = scalar_lea.sflag [#allocation13], %s437
          %s439 = sand.u32 %s197, 1
          %s440 = smul.addr %s439, 128
          %s441 = scalar_lea.vmem [#allocation12], %s440
          %s442 = sadd.s32 %s40, %s41
          %s443 = smul.u32 2, %s442
          %445 = vsyncadd %s438, 0
          %s446 = smul.addr %s443, 8
          %s447 = smul.addr %s446, 8
          %s448 = scalar_lea.hbm %s5, %s447
          %s449 = sshll.u32 %s448, 4
          %s450 = int_to_ptr.hbm [resolvable:$true] %s449
          %s451 = sshll.u32 %s441, 4
          %s452 = int_to_ptr.vmem [resolvable:$true] %s451
          %457 = dma.hbm_to_vmem [thread:$0]  %s450, 2048, %s452, %s438, 1024, 1024, 64
        $region40: #{tpu_custom_call.1} parent=15 // pred_fallthru
          _
        // Predicated region
        $region41: #{tpu_custom_call.1} parent=15 // pred_check
          %p458 = pneg %p235
        $region42: #{tpu_custom_call.1} parent=15 // pred_check_branch
          %460 = sbr.rel (%p458) target = $region44
        $region43: #{tpu_custom_call.1} parent=15 // pred_region
          %s461 = sand.u32 %s33, 1
          %s462 = scalar_lea.sflag [#allocation13], %s461
          %s463 = sand.u32 %s225, 1
          %s464 = smul.addr %s463, 64
          %s465 = scalar_lea.vmem [#allocation14], %s464
          %s466 = sadd.s32 %s40, %s41
          %s467 = smul.u32 2, %s466
          %469 = vsyncadd %s462, 0
          %s470 = smul.addr %s467, 8
          %s471 = smul.addr %s470, 4
          %s472 = scalar_lea.hbm %s6, %s471
          %s473 = sshll.u32 %s472, 4
          %s474 = int_to_ptr.hbm [resolvable:$true] %s473
          %s475 = sshll.u32 %s465, 4
          %s476 = int_to_ptr.vmem [resolvable:$true] %s475
          %481 = dma.hbm_to_vmem [thread:$0]  %s474, 1024, %s476, %s462, 512, 512, 32
        $region44: #{tpu_custom_call.1} parent=15 // pred_fallthru
          _
      $region16: #{tpu_custom_call.1} parent=5 // pred_fallthru
        _
      %p482 = scmp.le.s32.totalorder 1, %s33
      %p483 = scmp.lt.s32.totalorder %s33, 3
      %p484 = pnand %p482, %p483
      %p485 = pneg %p484
      // Predicated region
      $region45: #{tpu_custom_call.1} parent=5 // pred_check
        _
      $region46: #{tpu_custom_call.1} parent=5 // pred_check_branch
        %487 = sbr.rel (%p484) target = $region48
      $region47: #{tpu_custom_call.1} parent=5 // pred_region
        %s488 = ssub.s32 %s33, 1
        %s489 = sand.u32 %s60, 1
        %s490 = scalar_lea.sflag [#allocation4], %s489
        %s491 = sand.u32 %s60, 1
        %s492 = smul.addr %s491, 128
        %s493 = scalar_lea.vmem [#allocation3], %s492
        // Predicated region
        $region49: #{tpu_custom_call.1} parent=47 // pred_check
          %p494 = pneg %p73
        $region50: #{tpu_custom_call.1} parent=47 // pred_check_branch
          %496 = sbr.rel (%p494) target = $region52
        $region51: #{tpu_custom_call.1} parent=47 // pred_region
          %498 = dma.done %s490, 2048
        $region52: #{tpu_custom_call.1} parent=47 // pred_fallthru
          _
        %s499 = sand.u32 %s38, 1
        %s500 = scalar_lea.sflag [#allocation7], %s499
        %s501 = sand.u32 %s88, 1
        %s502 = smul.addr %s501, 64
        %s503 = scalar_lea.vmem [#allocation6], %s502
        // Predicated region
        $region53: #{tpu_custom_call.1} parent=47 // pred_check
          %p504 = pneg %p101
        $region54: #{tpu_custom_call.1} parent=47 // pred_check_branch
          %506 = sbr.rel (%p504) target = $region56
        $region55: #{tpu_custom_call.1} parent=47 // pred_region
          %508 = dma.done %s500, 1024
        $region56: #{tpu_custom_call.1} parent=47 // pred_fallthru
          _
        %s509 = sand.u32 %s38, 1
        %s510 = scalar_lea.sflag [#allocation7], %s509
        %s511 = sand.u32 %s116, 1
        %s512 = smul.addr %s511, 64
        %s513 = scalar_lea.vmem [#allocation8], %s512
        // Predicated region
        $region57: #{tpu_custom_call.1} parent=47 // pred_check
          %p514 = pneg %p129
        $region58: #{tpu_custom_call.1} parent=47 // pred_check_branch
          %516 = sbr.rel (%p514) target = $region60
        $region59: #{tpu_custom_call.1} parent=47 // pred_region
          %518 = dma.done %s510, 1024
        $region60: #{tpu_custom_call.1} parent=47 // pred_fallthru
          _
        %s519 = sand.u32 %s38, 1
        %s520 = scalar_lea.sflag [#allocation10], %s519
        %s521 = sand.u32 %s144, 1
        %s522 = smul.addr %s521, 128
        %s523 = scalar_lea.vmem [#allocation9], %s522
        // Predicated region
        $region61: #{tpu_custom_call.1} parent=47 // pred_check
          %p524 = pneg %p157
        $region62: #{tpu_custom_call.1} parent=47 // pred_check_branch
          %526 = sbr.rel (%p524) target = $region64
        $region63: #{tpu_custom_call.1} parent=47 // pred_region
          %528 = dma.done %s520, 2048
        $region64: #{tpu_custom_call.1} parent=47 // pred_fallthru
          _
        %s529 = sand.u32 %s38, 1
        %s530 = scalar_lea.sflag [#allocation10], %s529
        %s531 = sand.u32 %s172, 1
        %s532 = smul.addr %s531, 128
        %s533 = scalar_lea.vmem [#allocation11], %s532
        // Predicated region
        $region65: #{tpu_custom_call.1} parent=47 // pred_check
          %p534 = pneg %p185
        $region66: #{tpu_custom_call.1} parent=47 // pred_check_branch
          %536 = sbr.rel (%p534) target = $region68
        $region67: #{tpu_custom_call.1} parent=47 // pred_region
          %538 = dma.done %s530, 2048
        $region68: #{tpu_custom_call.1} parent=47 // pred_fallthru
          _
        %s539 = sand.u32 %s38, 1
        %s540 = scalar_lea.sflag [#allocation13], %s539
        %s541 = sand.u32 %s200, 1
        %s542 = smul.addr %s541, 128
        %s543 = scalar_lea.vmem [#allocation12], %s542
        // Predicated region
        $region69: #{tpu_custom_call.1} parent=47 // pred_check
          %p544 = pneg %p213
        $region70: #{tpu_custom_call.1} parent=47 // pred_check_branch
          %546 = sbr.rel (%p544) target = $region72
        $region71: #{tpu_custom_call.1} parent=47 // pred_region
          %548 = dma.done %s540, 2048
        $region72: #{tpu_custom_call.1} parent=47 // pred_fallthru
          _
        %s549 = sand.u32 %s38, 1
        %s550 = scalar_lea.sflag [#allocation13], %s549
        %s551 = sand.u32 %s228, 1
        %s552 = smul.addr %s551, 64
        %s553 = scalar_lea.vmem [#allocation14], %s552
        // Predicated region
        $region73: #{tpu_custom_call.1} parent=47 // pred_check
          %p554 = pneg %p241
        $region74: #{tpu_custom_call.1} parent=47 // pred_check_branch
          %556 = sbr.rel (%p554) target = $region76
        $region75: #{tpu_custom_call.1} parent=47 // pred_region
          %558 = dma.done %s550, 1024
        $region76: #{tpu_custom_call.1} parent=47 // pred_fallthru
          _
        %s559 = sand.u32 %s60, 1
        %s560 = scalar_lea.sflag [#allocation4], %s559
        %s561 = sand.u32 %s60, 1
        %s562 = smul.addr %s561, 128
        %s563 = scalar_lea.vmem [#allocation3], %s562
        %p564 = pneg %p73
        %p565 = pneg %p70
        %s566 = sand.u32 %s38, 1
        %s567 = scalar_lea.sflag [#allocation7], %s566
        %s568 = sand.u32 %s88, 1
        %s569 = smul.addr %s568, 64
        %s570 = scalar_lea.vmem [#allocation6], %s569
        %p571 = pneg %p101
        %p572 = pneg %p98
        %s573 = sand.u32 %s38, 1
        %s574 = scalar_lea.sflag [#allocation7], %s573
        %s575 = sand.u32 %s116, 1
        %s576 = smul.addr %s575, 64
        %s577 = scalar_lea.vmem [#allocation8], %s576
        %p578 = pneg %p129
        %p579 = pneg %p126
        %s580 = sand.u32 %s38, 1
        %s581 = scalar_lea.sflag [#allocation10], %s580
        %s582 = sand.u32 %s144, 1
        %s583 = smul.addr %s582, 128
        %s584 = scalar_lea.vmem [#allocation9], %s583
        %p585 = pneg %p157
        %p586 = pneg %p154
        %s587 = sand.u32 %s38, 1
        %s588 = scalar_lea.sflag [#allocation10], %s587
        %s589 = sand.u32 %s172, 1
        %s590 = smul.addr %s589, 128
        %s591 = scalar_lea.vmem [#allocation11], %s590
        %p592 = pneg %p185
        %p593 = pneg %p182
        %s594 = sand.u32 %s38, 1
        %s595 = scalar_lea.sflag [#allocation13], %s594
        %s596 = sand.u32 %s200, 1
        %s597 = smul.addr %s596, 128
        %s598 = scalar_lea.vmem [#allocation12], %s597
        %p599 = pneg %p213
        %p600 = pneg %p210
        %s601 = sand.u32 %s38, 1
        %s602 = scalar_lea.sflag [#allocation13], %s601
        %s603 = sand.u32 %s228, 1
        %s604 = smul.addr %s603, 64
        %s605 = scalar_lea.vmem [#allocation14], %s604
        %p606 = pneg %p241
        %p607 = pneg %p238
        %p608 = pneg %p269
        %p609 = pneg %p266
        %s610 = sand.u32 %s256, 1
        %s611 = scalar_lea.sflag [#allocation5], %s610
        %s612 = sand.u32 %s256, 1
        %s613 = smul.addr %s612, 128
        %s614 = scalar_lea.vmem [#allocation15], %s613
        %p615 = pneg %p295
        %p616 = pneg %p292
        %s617 = sand.u32 %s282, 1
        %s618 = scalar_lea.sflag [#allocation17], %s617
        %s619 = sand.u32 %s282, 1
        %s620 = smul.addr %s619, 8
        %s621 = scalar_lea.vmem [#allocation16], %s620
        %s622 = sadd.s32 %s42, %s43
        %s623 = smul.u32 2, %s622
        %s624 = sadd.s32 %s42, %s43
        %s625 = smul.u32 2, %s624
        %s626 = sadd.s32 %s42, %s43
        %s627 = smul.u32 2, %s626
        %s628 = sadd.s32 %s42, %s43
        %s629 = smul.u32 2, %s628
        %s630 = sadd.s32 %s42, %s43
        %s631 = smul.u32 2, %s630
        %s632 = sadd.s32 %s42, %s43
        %s633 = smul.u32 2, %s632
        %s634 = sadd.s32 %s42, %s43
        %s635 = smul.u32 2, %s634
        %s636 = sadd.s32 %s42, %s43
        %s637 = smul.u32 2, %s636
        %p638 = scmp.eq.s32.totalorder %s43, 0
        // Predicated region
        $region77: #{tpu_custom_call.1} parent=47 // pred_check
          %p639 = pneg %p638
        $region78: #{tpu_custom_call.1} parent=47 // pred_check_branch
          %641 = sbr.rel (%p639) target = $region80
        $region79: #{tpu_custom_call.1} parent=47 // pred_region
          %642 = vst [vmem:[#allocation2] sm:$0xff] 0.0
          %643 = vst [vmem:[#allocation2 + $0x8] sm:$0xff] 0.0
          %644 = vst [vmem:[#allocation2 + $0x10] sm:$0xff] 0.0
          %645 = vst [vmem:[#allocation2 + $0x18] sm:$0xff] 0.0
          %646 = vst [vmem:[#allocation2 + $0x20] sm:$0xff] 0.0
          %647 = vst [vmem:[#allocation2 + $0x28] sm:$0xff] 0.0
          %648 = vst [vmem:[#allocation2 + $0x30] sm:$0xff] 0.0
          %649 = vst [vmem:[#allocation2 + $0x38] sm:$0xff] 0.0
          %650 = vst [vmem:[#allocation2 + $0x40] sm:$0xff] 0.0
          %651 = vst [vmem:[#allocation2 + $0x48] sm:$0xff] 0.0
          %652 = vst [vmem:[#allocation2 + $0x50] sm:$0xff] 0.0
          %653 = vst [vmem:[#allocation2 + $0x58] sm:$0xff] 0.0
          %654 = vst [vmem:[#allocation2 + $0x60] sm:$0xff] 0.0
          %655 = vst [vmem:[#allocation2 + $0x68] sm:$0xff] 0.0
          %656 = vst [vmem:[#allocation2 + $0x70] sm:$0xff] 0.0
          %657 = vst [vmem:[#allocation2 + $0x78] sm:$0xff] 0.0
          %658 = vst [vmem:[#allocation2 + $0x80] sm:$0xff] 0.0
          %659 = vst [vmem:[#allocation2 + $0x88] sm:$0xff] 0.0
          %660 = vst [vmem:[#allocation2 + $0x90] sm:$0xff] 0.0
          %661 = vst [vmem:[#allocation2 + $0x98] sm:$0xff] 0.0
          %662 = vst [vmem:[#allocation2 + $0xa0] sm:$0xff] 0.0
          %663 = vst [vmem:[#allocation2 + $0xa8] sm:$0xff] 0.0
          %664 = vst [vmem:[#allocation2 + $0xb0] sm:$0xff] 0.0
          %665 = vst [vmem:[#allocation2 + $0xb8] sm:$0xff] 0.0
          %666 = vst [vmem:[#allocation2 + $0xc0] sm:$0xff] 0.0
          %667 = vst [vmem:[#allocation2 + $0xc8] sm:$0xff] 0.0
          %668 = vst [vmem:[#allocation2 + $0xd0] sm:$0xff] 0.0
          %669 = vst [vmem:[#allocation2 + $0xd8] sm:$0xff] 0.0
          %670 = vst [vmem:[#allocation2 + $0xe0] sm:$0xff] 0.0
          %671 = vst [vmem:[#allocation2 + $0xe8] sm:$0xff] 0.0
          %672 = vst [vmem:[#allocation2 + $0xf0] sm:$0xff] 0.0
          %673 = vst [vmem:[#allocation2 + $0xf8] sm:$0xff] 0.0
          %674 = vst [vmem:[#allocation2 + $0x100] sm:$0xff] 0.0
          %675 = vst [vmem:[#allocation2 + $0x108] sm:$0xff] 0.0
          %676 = vst [vmem:[#allocation2 + $0x110] sm:$0xff] 0.0
          %677 = vst [vmem:[#allocation2 + $0x118] sm:$0xff] 0.0
          %678 = vst [vmem:[#allocation2 + $0x120] sm:$0xff] 0.0
          %679 = vst [vmem:[#allocation2 + $0x128] sm:$0xff] 0.0
          %680 = vst [vmem:[#allocation2 + $0x130] sm:$0xff] 0.0
          %681 = vst [vmem:[#allocation2 + $0x138] sm:$0xff] 0.0
          %682 = vst [vmem:[#allocation2 + $0x140] sm:$0xff] 0.0
          %683 = vst [vmem:[#allocation2 + $0x148] sm:$0xff] 0.0
          %684 = vst [vmem:[#allocation2 + $0x150] sm:$0xff] 0.0
          %685 = vst [vmem:[#allocation2 + $0x158] sm:$0xff] 0.0
          %686 = vst [vmem:[#allocation2 + $0x160] sm:$0xff] 0.0
          %687 = vst [vmem:[#allocation2 + $0x168] sm:$0xff] 0.0
          %688 = vst [vmem:[#allocation2 + $0x170] sm:$0xff] 0.0
          %689 = vst [vmem:[#allocation2 + $0x178] sm:$0xff] 0.0
          %690 = vst [vmem:[#allocation2 + $0x180] sm:$0xff] 0.0
          %691 = vst [vmem:[#allocation2 + $0x188] sm:$0xff] 0.0
          %692 = vst [vmem:[#allocation2 + $0x190] sm:$0xff] 0.0
          %693 = vst [vmem:[#allocation2 + $0x198] sm:$0xff] 0.0
          %694 = vst [vmem:[#allocation2 + $0x1a0] sm:$0xff] 0.0
          %695 = vst [vmem:[#allocation2 + $0x1a8] sm:$0xff] 0.0
          %696 = vst [vmem:[#allocation2 + $0x1b0] sm:$0xff] 0.0
          %697 = vst [vmem:[#allocation2 + $0x1b8] sm:$0xff] 0.0
          %698 = vst [vmem:[#allocation2 + $0x1c0] sm:$0xff] 0.0
          %699 = vst [vmem:[#allocation2 + $0x1c8] sm:$0xff] 0.0
          %700 = vst [vmem:[#allocation2 + $0x1d0] sm:$0xff] 0.0
          %701 = vst [vmem:[#allocation2 + $0x1d8] sm:$0xff] 0.0
          %702 = vst [vmem:[#allocation2 + $0x1e0] sm:$0xff] 0.0
          %703 = vst [vmem:[#allocation2 + $0x1e8] sm:$0xff] 0.0
          %704 = vst [vmem:[#allocation2 + $0x1f0] sm:$0xff] 0.0
          %705 = vst [vmem:[#allocation2 + $0x1f8] sm:$0xff] 0.0
          %706 = vst [vmem:[#allocation2 + $0x200] sm:$0xff] 0.0
          %707 = vst [vmem:[#allocation2 + $0x208] sm:$0xff] 0.0
          %708 = vst [vmem:[#allocation2 + $0x210] sm:$0xff] 0.0
          %709 = vst [vmem:[#allocation2 + $0x218] sm:$0xff] 0.0
          %710 = vst [vmem:[#allocation2 + $0x220] sm:$0xff] 0.0
          %711 = vst [vmem:[#allocation2 + $0x228] sm:$0xff] 0.0
          %712 = vst [vmem:[#allocation2 + $0x230] sm:$0xff] 0.0
          %713 = vst [vmem:[#allocation2 + $0x238] sm:$0xff] 0.0
          %714 = vst [vmem:[#allocation2 + $0x240] sm:$0xff] 0.0
          %715 = vst [vmem:[#allocation2 + $0x248] sm:$0xff] 0.0
          %716 = vst [vmem:[#allocation2 + $0x250] sm:$0xff] 0.0
          %717 = vst [vmem:[#allocation2 + $0x258] sm:$0xff] 0.0
          %718 = vst [vmem:[#allocation2 + $0x260] sm:$0xff] 0.0
          %719 = vst [vmem:[#allocation2 + $0x268] sm:$0xff] 0.0
          %720 = vst [vmem:[#allocation2 + $0x270] sm:$0xff] 0.0
          %721 = vst [vmem:[#allocation2 + $0x278] sm:$0xff] 0.0
          %722 = vst [vmem:[#allocation2 + $0x280] sm:$0xff] 0.0
          %723 = vst [vmem:[#allocation2 + $0x288] sm:$0xff] 0.0
          %724 = vst [vmem:[#allocation2 + $0x290] sm:$0xff] 0.0
          %725 = vst [vmem:[#allocation2 + $0x298] sm:$0xff] 0.0
          %726 = vst [vmem:[#allocation2 + $0x2a0] sm:$0xff] 0.0
          %727 = vst [vmem:[#allocation2 + $0x2a8] sm:$0xff] 0.0
          %728 = vst [vmem:[#allocation2 + $0x2b0] sm:$0xff] 0.0
          %729 = vst [vmem:[#allocation2 + $0x2b8] sm:$0xff] 0.0
          %730 = vst [vmem:[#allocation2 + $0x2c0] sm:$0xff] 0.0
          %731 = vst [vmem:[#allocation2 + $0x2c8] sm:$0xff] 0.0
          %732 = vst [vmem:[#allocation2 + $0x2d0] sm:$0xff] 0.0
          %733 = vst [vmem:[#allocation2 + $0x2d8] sm:$0xff] 0.0
          %734 = vst [vmem:[#allocation2 + $0x2e0] sm:$0xff] 0.0
          %735 = vst [vmem:[#allocation2 + $0x2e8] sm:$0xff] 0.0
          %736 = vst [vmem:[#allocation2 + $0x2f0] sm:$0xff] 0.0
          %737 = vst [vmem:[#allocation2 + $0x2f8] sm:$0xff] 0.0
          %738 = vst [vmem:[#allocation2 + $0x300] sm:$0xff] 0.0
          %739 = vst [vmem:[#allocation2 + $0x308] sm:$0xff] 0.0
          %740 = vst [vmem:[#allocation2 + $0x310] sm:$0xff] 0.0
          %741 = vst [vmem:[#allocation2 + $0x318] sm:$0xff] 0.0
          %742 = vst [vmem:[#allocation2 + $0x320] sm:$0xff] 0.0
          %743 = vst [vmem:[#allocation2 + $0x328] sm:$0xff] 0.0
          %744 = vst [vmem:[#allocation2 + $0x330] sm:$0xff] 0.0
          %745 = vst [vmem:[#allocation2 + $0x338] sm:$0xff] 0.0
          %746 = vst [vmem:[#allocation2 + $0x340] sm:$0xff] 0.0
          %747 = vst [vmem:[#allocation2 + $0x348] sm:$0xff] 0.0
          %748 = vst [vmem:[#allocation2 + $0x350] sm:$0xff] 0.0
          %749 = vst [vmem:[#allocation2 + $0x358] sm:$0xff] 0.0
          %750 = vst [vmem:[#allocation2 + $0x360] sm:$0xff] 0.0
          %751 = vst [vmem:[#allocation2 + $0x368] sm:$0xff] 0.0
          %752 = vst [vmem:[#allocation2 + $0x370] sm:$0xff] 0.0
          %753 = vst [vmem:[#allocation2 + $0x378] sm:$0xff] 0.0
        $region80: #{tpu_custom_call.1} parent=47 // pred_fallthru
          _
        %v754 = vld [vmem:[%s493] sm:$0xff]
        %v755 = vld [vmem:[%s493 + $0x8] sm:$0xff]
        %v756 = vld [vmem:[%s493 + $0x10] sm:$0xff]
        %v757 = vld [vmem:[%s493 + $0x18] sm:$0xff]
        %v758 = vld [vmem:[%s493 + $0x20] sm:$0xff]
        %v759 = vld [vmem:[%s493 + $0x28] sm:$0xff]
        %v760 = vld [vmem:[%s493 + $0x30] sm:$0xff]
        %v761 = vld [vmem:[%s493 + $0x38] sm:$0xff]
        %v762 = vld [vmem:[%s493 + $0x40] sm:$0xff]
        %v763 = vld [vmem:[%s493 + $0x48] sm:$0xff]
        %v764 = vld [vmem:[%s493 + $0x50] sm:$0xff]
        %v765 = vld [vmem:[%s493 + $0x58] sm:$0xff]
        %v766 = vld [vmem:[%s493 + $0x60] sm:$0xff]
        %v767 = vld [vmem:[%s493 + $0x68] sm:$0xff]
        %v768 = vld [vmem:[%s493 + $0x70] sm:$0xff]
        %v769 = vld [vmem:[%s493 + $0x78] sm:$0xff]
        %v770 = vld [vmem:[%s523] sm:$0xff]
        %v771 = vld [vmem:[%s523 + $0x8] sm:$0xff]
        %v772 = vld [vmem:[%s523 + $0x10] sm:$0xff]
        %v773 = vld [vmem:[%s523 + $0x18] sm:$0xff]
        %v774 = vld [vmem:[%s523 + $0x20] sm:$0xff]
        %v775 = vld [vmem:[%s523 + $0x28] sm:$0xff]
        %v776 = vld [vmem:[%s523 + $0x30] sm:$0xff]
        %v777 = vld [vmem:[%s523 + $0x38] sm:$0xff]
        %v778 = vld [vmem:[%s523 + $0x40] sm:$0xff]
        %v779 = vld [vmem:[%s523 + $0x48] sm:$0xff]
        %v780 = vld [vmem:[%s523 + $0x50] sm:$0xff]
        %v781 = vld [vmem:[%s523 + $0x58] sm:$0xff]
        %v782 = vld [vmem:[%s523 + $0x60] sm:$0xff]
        %v783 = vld [vmem:[%s523 + $0x68] sm:$0xff]
        %v784 = vld [vmem:[%s523 + $0x70] sm:$0xff]
        %v785 = vld [vmem:[%s523 + $0x78] sm:$0xff]
        %v786 = vld [vmem:[%s533] sm:$0xff]
        %v787 = vld [vmem:[%s533 + $0x8] sm:$0xff]
        %v788 = vld [vmem:[%s533 + $0x10] sm:$0xff]
        %v789 = vld [vmem:[%s533 + $0x18] sm:$0xff]
        %v790 = vld [vmem:[%s533 + $0x20] sm:$0xff]
        %v791 = vld [vmem:[%s533 + $0x28] sm:$0xff]
        %v792 = vld [vmem:[%s533 + $0x30] sm:$0xff]
        %v793 = vld [vmem:[%s533 + $0x38] sm:$0xff]
        %v794 = vld [vmem:[%s533 + $0x40] sm:$0xff]
        %v795 = vld [vmem:[%s533 + $0x48] sm:$0xff]
        %v796 = vld [vmem:[%s533 + $0x50] sm:$0xff]
        %v797 = vld [vmem:[%s533 + $0x58] sm:$0xff]
        %v798 = vld [vmem:[%s533 + $0x60] sm:$0xff]
        %v799 = vld [vmem:[%s533 + $0x68] sm:$0xff]
        %v800 = vld [vmem:[%s533 + $0x70] sm:$0xff]
        %v801 = vld [vmem:[%s533 + $0x78] sm:$0xff]
        %v802 = vld [vmem:[%s543] sm:$0xff]
        %v803 = vld [vmem:[%s543 + $0x8] sm:$0xff]
        %v804 = vld [vmem:[%s543 + $0x10] sm:$0xff]
        %v805 = vld [vmem:[%s543 + $0x18] sm:$0xff]
        %v806 = vld [vmem:[%s543 + $0x20] sm:$0xff]
        %v807 = vld [vmem:[%s543 + $0x28] sm:$0xff]
        %v808 = vld [vmem:[%s543 + $0x30] sm:$0xff]
        %v809 = vld [vmem:[%s543 + $0x38] sm:$0xff]
        %v810 = vld [vmem:[%s543 + $0x40] sm:$0xff]
        %v811 = vld [vmem:[%s543 + $0x48] sm:$0xff]
        %v812 = vld [vmem:[%s543 + $0x50] sm:$0xff]
        %v813 = vld [vmem:[%s543 + $0x58] sm:$0xff]
        %v814 = vld [vmem:[%s543 + $0x60] sm:$0xff]
        %v815 = vld [vmem:[%s543 + $0x68] sm:$0xff]
        %v816 = vld [vmem:[%s543 + $0x70] sm:$0xff]
        %v817 = vld [vmem:[%s543 + $0x78] sm:$0xff]
        %v818 = vld [vmem:[%s503] sm:$0xff]
        %v819 = vld [vmem:[%s503 + $0x8] sm:$0xff]
        %v820 = vld [vmem:[%s503 + $0x10] sm:$0xff]
        %v821 = vld [vmem:[%s503 + $0x18] sm:$0xff]
        %v822 = vld [vmem:[%s503 + $0x20] sm:$0xff]
        %v823 = vld [vmem:[%s503 + $0x28] sm:$0xff]
        %v824 = vld [vmem:[%s503 + $0x30] sm:$0xff]
        %v825 = vld [vmem:[%s503 + $0x38] sm:$0xff]
        %v826 = vunpack.c.l.bf16 %v818
        %v827 = vunpack.c.h.bf16 %v818
        %v828 = vunpack.c.l.bf16 %v819
        %v829 = vunpack.c.h.bf16 %v819
        %v830 = vunpack.c.l.bf16 %v820
        %v831 = vunpack.c.h.bf16 %v820
        %v832 = vunpack.c.l.bf16 %v821
        %v833 = vunpack.c.h.bf16 %v821
        %v834 = vunpack.c.l.bf16 %v822
        %v835 = vunpack.c.h.bf16 %v822
        %v836 = vunpack.c.l.bf16 %v823
        %v837 = vunpack.c.h.bf16 %v823
        %v838 = vunpack.c.l.bf16 %v824
        %v839 = vunpack.c.h.bf16 %v824
        %v840 = vunpack.c.l.bf16 %v825
        %v841 = vunpack.c.h.bf16 %v825
        %v842 = vld [vmem:[%s513] sm:$0xff]
        %v843 = vld [vmem:[%s513 + $0x8] sm:$0xff]
        %v844 = vld [vmem:[%s513 + $0x10] sm:$0xff]
        %v845 = vld [vmem:[%s513 + $0x18] sm:$0xff]
        %v846 = vld [vmem:[%s513 + $0x20] sm:$0xff]
        %v847 = vld [vmem:[%s513 + $0x28] sm:$0xff]
        %v848 = vld [vmem:[%s513 + $0x30] sm:$0xff]
        %v849 = vld [vmem:[%s513 + $0x38] sm:$0xff]
        %v850 = vunpack.c.l.bf16 %v842
        %v851 = vunpack.c.h.bf16 %v842
        %v852 = vunpack.c.l.bf16 %v843
        %v853 = vunpack.c.h.bf16 %v843
        %v854 = vunpack.c.l.bf16 %v844
        %v855 = vunpack.c.h.bf16 %v844
        %v856 = vunpack.c.l.bf16 %v845
        %v857 = vunpack.c.h.bf16 %v845
        %v858 = vunpack.c.l.bf16 %v846
        %v859 = vunpack.c.h.bf16 %v846
        %v860 = vunpack.c.l.bf16 %v847
        %v861 = vunpack.c.h.bf16 %v847
        %v862 = vunpack.c.l.bf16 %v848
        %v863 = vunpack.c.h.bf16 %v848
        %v864 = vunpack.c.l.bf16 %v849
        %v865 = vunpack.c.h.bf16 %v849
        %v866 = vld [vmem:[%s553] sm:$0xff]
        %v867 = vld [vmem:[%s553 + $0x8] sm:$0xff]
        %v868 = vld [vmem:[%s553 + $0x10] sm:$0xff]
        %v869 = vld [vmem:[%s553 + $0x18] sm:$0xff]
        %v870 = vld [vmem:[%s553 + $0x20] sm:$0xff]
        %v871 = vld [vmem:[%s553 + $0x28] sm:$0xff]
        %v872 = vld [vmem:[%s553 + $0x30] sm:$0xff]
        %v873 = vld [vmem:[%s553 + $0x38] sm:$0xff]
        %v874 = vunpack.c.l.bf16 %v866
        %v875 = vunpack.c.h.bf16 %v866
        %v876 = vunpack.c.l.bf16 %v867
        %v877 = vunpack.c.h.bf16 %v867
        %v878 = vunpack.c.l.bf16 %v868
        %v879 = vunpack.c.h.bf16 %v868
        %v880 = vunpack.c.l.bf16 %v869
        %v881 = vunpack.c.h.bf16 %v869
        %v882 = vunpack.c.l.bf16 %v870
        %v883 = vunpack.c.h.bf16 %v870
        %v884 = vunpack.c.l.bf16 %v871
        %v885 = vunpack.c.h.bf16 %v871
        %v886 = vunpack.c.l.bf16 %v872
        %v887 = vunpack.c.h.bf16 %v872
        %v888 = vunpack.c.l.bf16 %v873
        %v889 = vunpack.c.h.bf16 %v873
        %v890 = vmul.f32 %v826, %v850
        %v891 = vmul.f32 %v827, %v851
        %v892 = vmul.f32 %v828, %v852
        %v893 = vmul.f32 %v829, %v853
        %v894 = vmul.f32 %v830, %v854
        %v895 = vmul.f32 %v831, %v855
        %v896 = vmul.f32 %v832, %v856
        %v897 = vmul.f32 %v833, %v857
        %v898 = vmul.f32 %v834, %v858
        %v899 = vmul.f32 %v835, %v859
        %v900 = vmul.f32 %v836, %v860
        %v901 = vmul.f32 %v837, %v861
        %v902 = vmul.f32 %v838, %v862
        %v903 = vmul.f32 %v839, %v863
        %v904 = vmul.f32 %v840, %v864
        %v905 = vmul.f32 %v841, %v865
        %v906 = vsub.f32 %v850, %v890
        %v907 = vsub.f32 %v851, %v891
        %v908 = vsub.f32 %v852, %v892
        %v909 = vsub.f32 %v853, %v893
        %v910 = vsub.f32 %v854, %v894
        %v911 = vsub.f32 %v855, %v895
        %v912 = vsub.f32 %v856, %v896
        %v913 = vsub.f32 %v857, %v897
        %v914 = vsub.f32 %v858, %v898
        %v915 = vsub.f32 %v859, %v899
        %v916 = vsub.f32 %v860, %v900
        %v917 = vsub.f32 %v861, %v901
        %v918 = vsub.f32 %v862, %v902
        %v919 = vsub.f32 %v863, %v903
        %v920 = vsub.f32 %v864, %v904
        %v921 = vsub.f32 %v865, %v905
        %vm922 = vcmp.ne.f32.partialorder %v826, 0.0
        %vm923 = vcmp.ne.f32.partialorder %v827, 0.0
        %vm924 = vcmp.ne.f32.partialorder %v828, 0.0
        %vm925 = vcmp.ne.f32.partialorder %v829, 0.0
        %vm926 = vcmp.ne.f32.partialorder %v830, 0.0
        %vm927 = vcmp.ne.f32.partialorder %v831, 0.0
        %vm928 = vcmp.ne.f32.partialorder %v832, 0.0
        %vm929 = vcmp.ne.f32.partialorder %v833, 0.0
        %vm930 = vcmp.ne.f32.partialorder %v834, 0.0
        %vm931 = vcmp.ne.f32.partialorder %v835, 0.0
        %vm932 = vcmp.ne.f32.partialorder %v836, 0.0
        %vm933 = vcmp.ne.f32.partialorder %v837, 0.0
        %vm934 = vcmp.ne.f32.partialorder %v838, 0.0
        %vm935 = vcmp.ne.f32.partialorder %v839, 0.0
        %vm936 = vcmp.ne.f32.partialorder %v840, 0.0
        %vm937 = vcmp.ne.f32.partialorder %v841, 0.0
        %v938 = vsub.f32 1.0, %v754
        %v939 = vsub.f32 1.0, %v755
        %v940 = vsub.f32 1.0, %v756
        %v941 = vsub.f32 1.0, %v757
        %v942 = vsub.f32 1.0, %v758
        %v943 = vsub.f32 1.0, %v759
        %v944 = vsub.f32 1.0, %v760
        %v945 = vsub.f32 1.0, %v761
        %v946 = vsub.f32 1.0, %v762
        %v947 = vsub.f32 1.0, %v763
        %v948 = vsub.f32 1.0, %v764
        %v949 = vsub.f32 1.0, %v765
        %v950 = vsub.f32 1.0, %v766
        %v951 = vsub.f32 1.0, %v767
        %v952 = vsub.f32 1.0, %v768
        %v953 = vsub.f32 1.0, %v769
        %v954 = vsel %vm922, %v754, %v938
        %v955 = vsel %vm923, %v755, %v939
        %v956 = vsel %vm924, %v756, %v940
        %v957 = vsel %vm925, %v757, %v941
        %v958 = vsel %vm926, %v758, %v942
        %v959 = vsel %vm927, %v759, %v943
        %v960 = vsel %vm928, %v760, %v944
        %v961 = vsel %vm929, %v761, %v945
        %v962 = vsel %vm930, %v762, %v946
        %v963 = vsel %vm931, %v763, %v947
        %v964 = vsel %vm932, %v764, %v948
        %v965 = vsel %vm933, %v765, %v949
        %v966 = vsel %vm934, %v766, %v950
        %v967 = vsel %vm935, %v767, %v951
        %v968 = vsel %vm936, %v768, %v952
        %v969 = vsel %vm937, %v769, %v953
        %v970 = vlog2.pop %v954
        %v971 = vmul.f32 %v970, 0.6931472
        %v972 = vlog2.pop %v955
        %v973 = vmul.f32 %v972, 0.6931472
        %v974 = vlog2.pop %v956
        %v975 = vmul.f32 %v974, 0.6931472
        %v976 = vlog2.pop %v957
        %v977 = vmul.f32 %v976, 0.6931472
        %v978 = vlog2.pop %v958
        %v979 = vmul.f32 %v978, 0.6931472
        %v980 = vlog2.pop %v959
        %v981 = vmul.f32 %v980, 0.6931472
        %v982 = vlog2.pop %v960
        %v983 = vmul.f32 %v982, 0.6931472
        %v984 = vlog2.pop %v961
        %v985 = vmul.f32 %v984, 0.6931472
        %v986 = vlog2.pop %v962
        %v987 = vmul.f32 %v986, 0.6931472
        %v988 = vlog2.pop %v963
        %v989 = vmul.f32 %v988, 0.6931472
        %v990 = vlog2.pop %v964
        %v991 = vmul.f32 %v990, 0.6931472
        %v992 = vlog2.pop %v965
        %v993 = vmul.f32 %v992, 0.6931472
        %v994 = vlog2.pop %v966
        %v995 = vmul.f32 %v994, 0.6931472
        %v996 = vlog2.pop %v967
        %v997 = vmul.f32 %v996, 0.6931472
        %v998 = vlog2.pop %v968
        %v999 = vmul.f32 %v998, 0.6931472
        %v1000 = vlog2.pop %v969
        %v1001 = vmul.f32 %v1000, 0.6931472
        %v1002 = vmax.f32 %v971, -100.0
        %v1003 = vmax.f32 %v973, -100.0
        %v1004 = vmax.f32 %v975, -100.0
        %v1005 = vmax.f32 %v977, -100.0
        %v1006 = vmax.f32 %v979, -100.0
        %v1007 = vmax.f32 %v981, -100.0
        %v1008 = vmax.f32 %v983, -100.0
        %v1009 = vmax.f32 %v985, -100.0
        %v1010 = vmax.f32 %v987, -100.0
        %v1011 = vmax.f32 %v989, -100.0
        %v1012 = vmax.f32 %v991, -100.0
        %v1013 = vmax.f32 %v993, -100.0
        %v1014 = vmax.f32 %v995, -100.0
        %v1015 = vmax.f32 %v997, -100.0
        %v1016 = vmax.f32 %v999, -100.0
        %v1017 = vmax.f32 %v1001, -100.0
        %v1018 = vsub.f32 0.0, %v1002
        %v1019 = vsub.f32 0.0, %v1003
        %v1020 = vsub.f32 0.0, %v1004
        %v1021 = vsub.f32 0.0, %v1005
        %v1022 = vsub.f32 0.0, %v1006
        %v1023 = vsub.f32 0.0, %v1007
        %v1024 = vsub.f32 0.0, %v1008
        %v1025 = vsub.f32 0.0, %v1009
        %v1026 = vsub.f32 0.0, %v1010
        %v1027 = vsub.f32 0.0, %v1011
        %v1028 = vsub.f32 0.0, %v1012
        %v1029 = vsub.f32 0.0, %v1013
        %v1030 = vsub.f32 0.0, %v1014
        %v1031 = vsub.f32 0.0, %v1015
        %v1032 = vsub.f32 0.0, %v1016
        %v1033 = vsub.f32 0.0, %v1017
        %v1034 = vmul.f32 %v1018, %v906
        %v1035 = vmul.f32 %v1019, %v907
        %v1036 = vmul.f32 %v1020, %v908
        %v1037 = vmul.f32 %v1021, %v909
        %v1038 = vmul.f32 %v1022, %v910
        %v1039 = vmul.f32 %v1023, %v911
        %v1040 = vmul.f32 %v1024, %v912
        %v1041 = vmul.f32 %v1025, %v913
        %v1042 = vmul.f32 %v1026, %v914
        %v1043 = vmul.f32 %v1027, %v915
        %v1044 = vmul.f32 %v1028, %v916
        %v1045 = vmul.f32 %v1029, %v917
        %v1046 = vmul.f32 %v1030, %v918
        %v1047 = vmul.f32 %v1031, %v919
        %v1048 = vmul.f32 %v1032, %v920
        %v1049 = vmul.f32 %v1033, %v921
        %1050 = vst [vmem:[%s614] sm:$0xff] %v1034
        %1051 = vst [vmem:[%s614 + $0x8] sm:$0xff] %v1035
        %1052 = vst [vmem:[%s614 + $0x10] sm:$0xff] %v1036
        %1053 = vst [vmem:[%s614 + $0x18] sm:$0xff] %v1037
        %1054 = vst [vmem:[%s614 + $0x20] sm:$0xff] %v1038
        %1055 = vst [vmem:[%s614 + $0x28] sm:$0xff] %v1039
        %1056 = vst [vmem:[%s614 + $0x30] sm:$0xff] %v1040
        %1057 = vst [vmem:[%s614 + $0x38] sm:$0xff] %v1041
        %1058 = vst [vmem:[%s614 + $0x40] sm:$0xff] %v1042
        %1059 = vst [vmem:[%s614 + $0x48] sm:$0xff] %v1043
        %1060 = vst [vmem:[%s614 + $0x50] sm:$0xff] %v1044
        %1061 = vst [vmem:[%s614 + $0x58] sm:$0xff] %v1045
        %1062 = vst [vmem:[%s614 + $0x60] sm:$0xff] %v1046
        %1063 = vst [vmem:[%s614 + $0x68] sm:$0xff] %v1047
        %1064 = vst [vmem:[%s614 + $0x70] sm:$0xff] %v1048
        %1065 = vst [vmem:[%s614 + $0x78] sm:$0xff] %v1049
        %v1066 = vld [vmem:[#allocation2] sm:$0xff]
        %v1067 = vld [vmem:[#allocation2 + $0x8] sm:$0xff]
        %v1068 = vld [vmem:[#allocation2 + $0x10] sm:$0xff]
        %v1069 = vld [vmem:[#allocation2 + $0x18] sm:$0xff]
        %v1070 = vld [vmem:[#allocation2 + $0x20] sm:$0xff]
        %v1071 = vld [vmem:[#allocation2 + $0x28] sm:$0xff]
        %v1072 = vld [vmem:[#allocation2 + $0x30] sm:$0xff]
        %v1073 = vld [vmem:[#allocation2 + $0x38] sm:$0xff]
        %v1074 = vld [vmem:[#allocation2 + $0x40] sm:$0xff]
        %v1075 = vld [vmem:[#allocation2 + $0x48] sm:$0xff]
        %v1076 = vld [vmem:[#allocation2 + $0x50] sm:$0xff]
        %v1077 = vld [vmem:[#allocation2 + $0x58] sm:$0xff]
        %v1078 = vld [vmem:[#allocation2 + $0x60] sm:$0xff]
        %v1079 = vld [vmem:[#allocation2 + $0x68] sm:$0xff]
        %v1080 = vld [vmem:[#allocation2 + $0x70] sm:$0xff]
        %v1081 = vld [vmem:[#allocation2 + $0x78] sm:$0xff]
        %v1082 = vmul.f32 %v1018, %v890
        %v1083 = vmul.f32 %v1019, %v891
        %v1084 = vmul.f32 %v1020, %v892
        %v1085 = vmul.f32 %v1021, %v893
        %v1086 = vmul.f32 %v1022, %v894
        %v1087 = vmul.f32 %v1023, %v895
        %v1088 = vmul.f32 %v1024, %v896
        %v1089 = vmul.f32 %v1025, %v897
        %v1090 = vmul.f32 %v1026, %v898
        %v1091 = vmul.f32 %v1027, %v899
        %v1092 = vmul.f32 %v1028, %v900
        %v1093 = vmul.f32 %v1029, %v901
        %v1094 = vmul.f32 %v1030, %v902
        %v1095 = vmul.f32 %v1031, %v903
        %v1096 = vmul.f32 %v1032, %v904
        %v1097 = vmul.f32 %v1033, %v905
        %v1098 = vadd.f32 %v1066, %v1082
        %v1099 = vadd.f32 %v1067, %v1083
        %v1100 = vadd.f32 %v1068, %v1084
        %v1101 = vadd.f32 %v1069, %v1085
        %v1102 = vadd.f32 %v1070, %v1086
        %v1103 = vadd.f32 %v1071, %v1087
        %v1104 = vadd.f32 %v1072, %v1088
        %v1105 = vadd.f32 %v1073, %v1089
        %v1106 = vadd.f32 %v1074, %v1090
        %v1107 = vadd.f32 %v1075, %v1091
        %v1108 = vadd.f32 %v1076, %v1092
        %v1109 = vadd.f32 %v1077, %v1093
        %v1110 = vadd.f32 %v1078, %v1094
        %v1111 = vadd.f32 %v1079, %v1095
        %v1112 = vadd.f32 %v1080, %v1096
        %v1113 = vadd.f32 %v1081, %v1097
        %1114 = vst [vmem:[#allocation2] sm:$0xff] %v1098
        %1115 = vst [vmem:[#allocation2 + $0x8] sm:$0xff] %v1099
        %1116 = vst [vmem:[#allocation2 + $0x10] sm:$0xff] %v1100
        %1117 = vst [vmem:[#allocation2 + $0x18] sm:$0xff] %v1101
        %1118 = vst [vmem:[#allocation2 + $0x20] sm:$0xff] %v1102
        %1119 = vst [vmem:[#allocation2 + $0x28] sm:$0xff] %v1103
        %1120 = vst [vmem:[#allocation2 + $0x30] sm:$0xff] %v1104
        %1121 = vst [vmem:[#allocation2 + $0x38] sm:$0xff] %v1105
        %1122 = vst [vmem:[#allocation2 + $0x40] sm:$0xff] %v1106
        %1123 = vst [vmem:[#allocation2 + $0x48] sm:$0xff] %v1107
        %1124 = vst [vmem:[#allocation2 + $0x50] sm:$0xff] %v1108
        %1125 = vst [vmem:[#allocation2 + $0x58] sm:$0xff] %v1109
        %1126 = vst [vmem:[#allocation2 + $0x60] sm:$0xff] %v1110
        %1127 = vst [vmem:[#allocation2 + $0x68] sm:$0xff] %v1111
        %1128 = vst [vmem:[#allocation2 + $0x70] sm:$0xff] %v1112
        %1129 = vst [vmem:[#allocation2 + $0x78] sm:$0xff] %v1113
        %s1130 = scalar_lea.vmem [#allocation2], 128
        %v1131 = vld [vmem:[%s1130] sm:$0xff]
        %v1132 = vld [vmem:[%s1130 + $0x8] sm:$0xff]
        %v1133 = vld [vmem:[%s1130 + $0x10] sm:$0xff]
        %v1134 = vld [vmem:[%s1130 + $0x18] sm:$0xff]
        %v1135 = vld [vmem:[%s1130 + $0x20] sm:$0xff]
        %v1136 = vld [vmem:[%s1130 + $0x28] sm:$0xff]
        %v1137 = vld [vmem:[%s1130 + $0x30] sm:$0xff]
        %v1138 = vld [vmem:[%s1130 + $0x38] sm:$0xff]
        %v1139 = vld [vmem:[%s1130 + $0x40] sm:$0xff]
        %v1140 = vld [vmem:[%s1130 + $0x48] sm:$0xff]
        %v1141 = vld [vmem:[%s1130 + $0x50] sm:$0xff]
        %v1142 = vld [vmem:[%s1130 + $0x58] sm:$0xff]
        %v1143 = vld [vmem:[%s1130 + $0x60] sm:$0xff]
        %v1144 = vld [vmem:[%s1130 + $0x68] sm:$0xff]
        %v1145 = vld [vmem:[%s1130 + $0x70] sm:$0xff]
        %v1146 = vld [vmem:[%s1130 + $0x78] sm:$0xff]
        %v1147 = vadd.f32 %v1131, %v890
        %v1148 = vadd.f32 %v1132, %v891
        %v1149 = vadd.f32 %v1133, %v892
        %v1150 = vadd.f32 %v1134, %v893
        %v1151 = vadd.f32 %v1135, %v894
        %v1152 = vadd.f32 %v1136, %v895
        %v1153 = vadd.f32 %v1137, %v896
        %v1154 = vadd.f32 %v1138, %v897
        %v1155 = vadd.f32 %v1139, %v898
        %v1156 = vadd.f32 %v1140, %v899
        %v1157 = vadd.f32 %v1141, %v900
        %v1158 = vadd.f32 %v1142, %v901
        %v1159 = vadd.f32 %v1143, %v902
        %v1160 = vadd.f32 %v1144, %v903
        %v1161 = vadd.f32 %v1145, %v904
        %v1162 = vadd.f32 %v1146, %v905
        %1163 = vst [vmem:[%s1130] sm:$0xff] %v1147
        %1164 = vst [vmem:[%s1130 + $0x8] sm:$0xff] %v1148
        %1165 = vst [vmem:[%s1130 + $0x10] sm:$0xff] %v1149
        %1166 = vst [vmem:[%s1130 + $0x18] sm:$0xff] %v1150
        %1167 = vst [vmem:[%s1130 + $0x20] sm:$0xff] %v1151
        %1168 = vst [vmem:[%s1130 + $0x28] sm:$0xff] %v1152
        %1169 = vst [vmem:[%s1130 + $0x30] sm:$0xff] %v1153
        %1170 = vst [vmem:[%s1130 + $0x38] sm:$0xff] %v1154
        %1171 = vst [vmem:[%s1130 + $0x40] sm:$0xff] %v1155
        %1172 = vst [vmem:[%s1130 + $0x48] sm:$0xff] %v1156
        %1173 = vst [vmem:[%s1130 + $0x50] sm:$0xff] %v1157
        %1174 = vst [vmem:[%s1130 + $0x58] sm:$0xff] %v1158
        %1175 = vst [vmem:[%s1130 + $0x60] sm:$0xff] %v1159
        %1176 = vst [vmem:[%s1130 + $0x68] sm:$0xff] %v1160
        %1177 = vst [vmem:[%s1130 + $0x70] sm:$0xff] %v1161
        %1178 = vst [vmem:[%s1130 + $0x78] sm:$0xff] %v1162
        %s1179 = scalar_lea.vmem [#allocation2], 256
        %v1180 = vld [vmem:[%s1179] sm:$0xff]
        %v1181 = vld [vmem:[%s1179 + $0x8] sm:$0xff]
        %v1182 = vld [vmem:[%s1179 + $0x10] sm:$0xff]
        %v1183 = vld [vmem:[%s1179 + $0x18] sm:$0xff]
        %v1184 = vld [vmem:[%s1179 + $0x20] sm:$0xff]
        %v1185 = vld [vmem:[%s1179 + $0x28] sm:$0xff]
        %v1186 = vld [vmem:[%s1179 + $0x30] sm:$0xff]
        %v1187 = vld [vmem:[%s1179 + $0x38] sm:$0xff]
        %v1188 = vld [vmem:[%s1179 + $0x40] sm:$0xff]
        %v1189 = vld [vmem:[%s1179 + $0x48] sm:$0xff]
        %v1190 = vld [vmem:[%s1179 + $0x50] sm:$0xff]
        %v1191 = vld [vmem:[%s1179 + $0x58] sm:$0xff]
        %v1192 = vld [vmem:[%s1179 + $0x60] sm:$0xff]
        %v1193 = vld [vmem:[%s1179 + $0x68] sm:$0xff]
        %v1194 = vld [vmem:[%s1179 + $0x70] sm:$0xff]
        %v1195 = vld [vmem:[%s1179 + $0x78] sm:$0xff]
        %v1196 = vadd.f32 %v1180, %v850
        %v1197 = vadd.f32 %v1181, %v851
        %v1198 = vadd.f32 %v1182, %v852
        %v1199 = vadd.f32 %v1183, %v853
        %v1200 = vadd.f32 %v1184, %v854
        %v1201 = vadd.f32 %v1185, %v855
        %v1202 = vadd.f32 %v1186, %v856
        %v1203 = vadd.f32 %v1187, %v857
        %v1204 = vadd.f32 %v1188, %v858
        %v1205 = vadd.f32 %v1189, %v859
        %v1206 = vadd.f32 %v1190, %v860
        %v1207 = vadd.f32 %v1191, %v861
        %v1208 = vadd.f32 %v1192, %v862
        %v1209 = vadd.f32 %v1193, %v863
        %v1210 = vadd.f32 %v1194, %v864
        %v1211 = vadd.f32 %v1195, %v865
        %1212 = vst [vmem:[%s1179] sm:$0xff] %v1196
        %1213 = vst [vmem:[%s1179 + $0x8] sm:$0xff] %v1197
        %1214 = vst [vmem:[%s1179 + $0x10] sm:$0xff] %v1198
        %1215 = vst [vmem:[%s1179 + $0x18] sm:$0xff] %v1199
        %1216 = vst [vmem:[%s1179 + $0x20] sm:$0xff] %v1200
        %1217 = vst [vmem:[%s1179 + $0x28] sm:$0xff] %v1201
        %1218 = vst [vmem:[%s1179 + $0x30] sm:$0xff] %v1202
        %1219 = vst [vmem:[%s1179 + $0x38] sm:$0xff] %v1203
        %1220 = vst [vmem:[%s1179 + $0x40] sm:$0xff] %v1204
        %1221 = vst [vmem:[%s1179 + $0x48] sm:$0xff] %v1205
        %1222 = vst [vmem:[%s1179 + $0x50] sm:$0xff] %v1206
        %1223 = vst [vmem:[%s1179 + $0x58] sm:$0xff] %v1207
        %1224 = vst [vmem:[%s1179 + $0x60] sm:$0xff] %v1208
        %1225 = vst [vmem:[%s1179 + $0x68] sm:$0xff] %v1209
        %1226 = vst [vmem:[%s1179 + $0x70] sm:$0xff] %v1210
        %1227 = vst [vmem:[%s1179 + $0x78] sm:$0xff] %v1211
        %s1228 = scalar_lea.vmem [#allocation2], 384
        %v1229 = vld [vmem:[%s1228] sm:$0xff]
        %v1230 = vld [vmem:[%s1228 + $0x8] sm:$0xff]
        %v1231 = vld [vmem:[%s1228 + $0x10] sm:$0xff]
        %v1232 = vld [vmem:[%s1228 + $0x18] sm:$0xff]
        %v1233 = vld [vmem:[%s1228 + $0x20] sm:$0xff]
        %v1234 = vld [vmem:[%s1228 + $0x28] sm:$0xff]
        %v1235 = vld [vmem:[%s1228 + $0x30] sm:$0xff]
        %v1236 = vld [vmem:[%s1228 + $0x38] sm:$0xff]
        %v1237 = vld [vmem:[%s1228 + $0x40] sm:$0xff]
        %v1238 = vld [vmem:[%s1228 + $0x48] sm:$0xff]
        %v1239 = vld [vmem:[%s1228 + $0x50] sm:$0xff]
        %v1240 = vld [vmem:[%s1228 + $0x58] sm:$0xff]
        %v1241 = vld [vmem:[%s1228 + $0x60] sm:$0xff]
        %v1242 = vld [vmem:[%s1228 + $0x68] sm:$0xff]
        %v1243 = vld [vmem:[%s1228 + $0x70] sm:$0xff]
        %v1244 = vld [vmem:[%s1228 + $0x78] sm:$0xff]
        %v1245 = vsub.f32 %v786, %v802
        %v1246 = vsub.f32 %v787, %v803
        %v1247 = vsub.f32 %v788, %v804
        %v1248 = vsub.f32 %v789, %v805
        %v1249 = vsub.f32 %v790, %v806
        %v1250 = vsub.f32 %v791, %v807
        %v1251 = vsub.f32 %v792, %v808
        %v1252 = vsub.f32 %v793, %v809
        %v1253 = vsub.f32 %v794, %v810
        %v1254 = vsub.f32 %v795, %v811
        %v1255 = vsub.f32 %v796, %v812
        %v1256 = vsub.f32 %v797, %v813
        %v1257 = vsub.f32 %v798, %v814
        %v1258 = vsub.f32 %v799, %v815
        %v1259 = vsub.f32 %v800, %v816
        %v1260 = vsub.f32 %v801, %v817
        %v1261 = vand.u32 2147483647, %v1245
        %v1262 = vand.u32 2147483647, %v1246
        %v1263 = vand.u32 2147483647, %v1247
        %v1264 = vand.u32 2147483647, %v1248
        %v1265 = vand.u32 2147483647, %v1249
        %v1266 = vand.u32 2147483647, %v1250
        %v1267 = vand.u32 2147483647, %v1251
        %v1268 = vand.u32 2147483647, %v1252
        %v1269 = vand.u32 2147483647, %v1253
        %v1270 = vand.u32 2147483647, %v1254
        %v1271 = vand.u32 2147483647, %v1255
        %v1272 = vand.u32 2147483647, %v1256
        %v1273 = vand.u32 2147483647, %v1257
        %v1274 = vand.u32 2147483647, %v1258
        %v1275 = vand.u32 2147483647, %v1259
        %v1276 = vand.u32 2147483647, %v1260
        %v1277 = vmul.f32 %v1261, %v874
        %v1278 = vmul.f32 %v1262, %v875
        %v1279 = vmul.f32 %v1263, %v876
        %v1280 = vmul.f32 %v1264, %v877
        %v1281 = vmul.f32 %v1265, %v878
        %v1282 = vmul.f32 %v1266, %v879
        %v1283 = vmul.f32 %v1267, %v880
        %v1284 = vmul.f32 %v1268, %v881
        %v1285 = vmul.f32 %v1269, %v882
        %v1286 = vmul.f32 %v1270, %v883
        %v1287 = vmul.f32 %v1271, %v884
        %v1288 = vmul.f32 %v1272, %v885
        %v1289 = vmul.f32 %v1273, %v886
        %v1290 = vmul.f32 %v1274, %v887
        %v1291 = vmul.f32 %v1275, %v888
        %v1292 = vmul.f32 %v1276, %v889
        %v1293 = vadd.f32 %v1229, %v1277
        %v1294 = vadd.f32 %v1230, %v1278
        %v1295 = vadd.f32 %v1231, %v1279
        %v1296 = vadd.f32 %v1232, %v1280
        %v1297 = vadd.f32 %v1233, %v1281
        %v1298 = vadd.f32 %v1234, %v1282
        %v1299 = vadd.f32 %v1235, %v1283
        %v1300 = vadd.f32 %v1236, %v1284
        %v1301 = vadd.f32 %v1237, %v1285
        %v1302 = vadd.f32 %v1238, %v1286
        %v1303 = vadd.f32 %v1239, %v1287
        %v1304 = vadd.f32 %v1240, %v1288
        %v1305 = vadd.f32 %v1241, %v1289
        %v1306 = vadd.f32 %v1242, %v1290
        %v1307 = vadd.f32 %v1243, %v1291
        %v1308 = vadd.f32 %v1244, %v1292
        %1309 = vst [vmem:[%s1228] sm:$0xff] %v1293
        %1310 = vst [vmem:[%s1228 + $0x8] sm:$0xff] %v1294
        %1311 = vst [vmem:[%s1228 + $0x10] sm:$0xff] %v1295
        %1312 = vst [vmem:[%s1228 + $0x18] sm:$0xff] %v1296
        %1313 = vst [vmem:[%s1228 + $0x20] sm:$0xff] %v1297
        %1314 = vst [vmem:[%s1228 + $0x28] sm:$0xff] %v1298
        %1315 = vst [vmem:[%s1228 + $0x30] sm:$0xff] %v1299
        %1316 = vst [vmem:[%s1228 + $0x38] sm:$0xff] %v1300
        %1317 = vst [vmem:[%s1228 + $0x40] sm:$0xff] %v1301
        %1318 = vst [vmem:[%s1228 + $0x48] sm:$0xff] %v1302
        %1319 = vst [vmem:[%s1228 + $0x50] sm:$0xff] %v1303
        %1320 = vst [vmem:[%s1228 + $0x58] sm:$0xff] %v1304
        %1321 = vst [vmem:[%s1228 + $0x60] sm:$0xff] %v1305
        %1322 = vst [vmem:[%s1228 + $0x68] sm:$0xff] %v1306
        %1323 = vst [vmem:[%s1228 + $0x70] sm:$0xff] %v1307
        %1324 = vst [vmem:[%s1228 + $0x78] sm:$0xff] %v1308
        %s1325 = scalar_lea.vmem [#allocation2], 512
        %v1326 = vld [vmem:[%s1325] sm:$0xff]
        %v1327 = vld [vmem:[%s1325 + $0x8] sm:$0xff]
        %v1328 = vld [vmem:[%s1325 + $0x10] sm:$0xff]
        %v1329 = vld [vmem:[%s1325 + $0x18] sm:$0xff]
        %v1330 = vld [vmem:[%s1325 + $0x20] sm:$0xff]
        %v1331 = vld [vmem:[%s1325 + $0x28] sm:$0xff]
        %v1332 = vld [vmem:[%s1325 + $0x30] sm:$0xff]
        %v1333 = vld [vmem:[%s1325 + $0x38] sm:$0xff]
        %v1334 = vld [vmem:[%s1325 + $0x40] sm:$0xff]
        %v1335 = vld [vmem:[%s1325 + $0x48] sm:$0xff]
        %v1336 = vld [vmem:[%s1325 + $0x50] sm:$0xff]
        %v1337 = vld [vmem:[%s1325 + $0x58] sm:$0xff]
        %v1338 = vld [vmem:[%s1325 + $0x60] sm:$0xff]
        %v1339 = vld [vmem:[%s1325 + $0x68] sm:$0xff]
        %v1340 = vld [vmem:[%s1325 + $0x70] sm:$0xff]
        %v1341 = vld [vmem:[%s1325 + $0x78] sm:$0xff]
        %v1342 = vadd.f32 %v1326, %v874
        %v1343 = vadd.f32 %v1327, %v875
        %v1344 = vadd.f32 %v1328, %v876
        %v1345 = vadd.f32 %v1329, %v877
        %v1346 = vadd.f32 %v1330, %v878
        %v1347 = vadd.f32 %v1331, %v879
        %v1348 = vadd.f32 %v1332, %v880
        %v1349 = vadd.f32 %v1333, %v881
        %v1350 = vadd.f32 %v1334, %v882
        %v1351 = vadd.f32 %v1335, %v883
        %v1352 = vadd.f32 %v1336, %v884
        %v1353 = vadd.f32 %v1337, %v885
        %v1354 = vadd.f32 %v1338, %v886
        %v1355 = vadd.f32 %v1339, %v887
        %v1356 = vadd.f32 %v1340, %v888
        %v1357 = vadd.f32 %v1341, %v889
        %1358 = vst [vmem:[%s1325] sm:$0xff] %v1342
        %1359 = vst [vmem:[%s1325 + $0x8] sm:$0xff] %v1343
        %1360 = vst [vmem:[%s1325 + $0x10] sm:$0xff] %v1344
        %1361 = vst [vmem:[%s1325 + $0x18] sm:$0xff] %v1345
        %1362 = vst [vmem:[%s1325 + $0x20] sm:$0xff] %v1346
        %1363 = vst [vmem:[%s1325 + $0x28] sm:$0xff] %v1347
        %1364 = vst [vmem:[%s1325 + $0x30] sm:$0xff] %v1348
        %1365 = vst [vmem:[%s1325 + $0x38] sm:$0xff] %v1349
        %1366 = vst [vmem:[%s1325 + $0x40] sm:$0xff] %v1350
        %1367 = vst [vmem:[%s1325 + $0x48] sm:$0xff] %v1351
        %1368 = vst [vmem:[%s1325 + $0x50] sm:$0xff] %v1352
        %1369 = vst [vmem:[%s1325 + $0x58] sm:$0xff] %v1353
        %1370 = vst [vmem:[%s1325 + $0x60] sm:$0xff] %v1354
        %1371 = vst [vmem:[%s1325 + $0x68] sm:$0xff] %v1355
        %1372 = vst [vmem:[%s1325 + $0x70] sm:$0xff] %v1356
        %1373 = vst [vmem:[%s1325 + $0x78] sm:$0xff] %v1357
        %s1374 = scalar_lea.vmem [#allocation2], 640
        %v1375 = vld [vmem:[%s1374] sm:$0xff]
        %v1376 = vld [vmem:[%s1374 + $0x8] sm:$0xff]
        %v1377 = vld [vmem:[%s1374 + $0x10] sm:$0xff]
        %v1378 = vld [vmem:[%s1374 + $0x18] sm:$0xff]
        %v1379 = vld [vmem:[%s1374 + $0x20] sm:$0xff]
        %v1380 = vld [vmem:[%s1374 + $0x28] sm:$0xff]
        %v1381 = vld [vmem:[%s1374 + $0x30] sm:$0xff]
        %v1382 = vld [vmem:[%s1374 + $0x38] sm:$0xff]
        %v1383 = vld [vmem:[%s1374 + $0x40] sm:$0xff]
        %v1384 = vld [vmem:[%s1374 + $0x48] sm:$0xff]
        %v1385 = vld [vmem:[%s1374 + $0x50] sm:$0xff]
        %v1386 = vld [vmem:[%s1374 + $0x58] sm:$0xff]
        %v1387 = vld [vmem:[%s1374 + $0x60] sm:$0xff]
        %v1388 = vld [vmem:[%s1374 + $0x68] sm:$0xff]
        %v1389 = vld [vmem:[%s1374 + $0x70] sm:$0xff]
        %v1390 = vld [vmem:[%s1374 + $0x78] sm:$0xff]
        %v1391 = vmul.f32 %v770, %v890
        %v1392 = vmul.f32 %v771, %v891
        %v1393 = vmul.f32 %v772, %v892
        %v1394 = vmul.f32 %v773, %v893
        %v1395 = vmul.f32 %v774, %v894
        %v1396 = vmul.f32 %v775, %v895
        %v1397 = vmul.f32 %v776, %v896
        %v1398 = vmul.f32 %v777, %v897
        %v1399 = vmul.f32 %v778, %v898
        %v1400 = vmul.f32 %v779, %v899
        %v1401 = vmul.f32 %v780, %v900
        %v1402 = vmul.f32 %v781, %v901
        %v1403 = vmul.f32 %v782, %v902
        %v1404 = vmul.f32 %v783, %v903
        %v1405 = vmul.f32 %v784, %v904
        %v1406 = vmul.f32 %v785, %v905
        %v1407 = vadd.f32 %v1375, %v1391
        %v1408 = vadd.f32 %v1376, %v1392
        %v1409 = vadd.f32 %v1377, %v1393
        %v1410 = vadd.f32 %v1378, %v1394
        %v1411 = vadd.f32 %v1379, %v1395
        %v1412 = vadd.f32 %v1380, %v1396
        %v1413 = vadd.f32 %v1381, %v1397
        %v1414 = vadd.f32 %v1382, %v1398
        %v1415 = vadd.f32 %v1383, %v1399
        %v1416 = vadd.f32 %v1384, %v1400
        %v1417 = vadd.f32 %v1385, %v1401
        %v1418 = vadd.f32 %v1386, %v1402
        %v1419 = vadd.f32 %v1387, %v1403
        %v1420 = vadd.f32 %v1388, %v1404
        %v1421 = vadd.f32 %v1389, %v1405
        %v1422 = vadd.f32 %v1390, %v1406
        %1423 = vst [vmem:[%s1374] sm:$0xff] %v1407
        %1424 = vst [vmem:[%s1374 + $0x8] sm:$0xff] %v1408
        %1425 = vst [vmem:[%s1374 + $0x10] sm:$0xff] %v1409
        %1426 = vst [vmem:[%s1374 + $0x18] sm:$0xff] %v1410
        %1427 = vst [vmem:[%s1374 + $0x20] sm:$0xff] %v1411
        %1428 = vst [vmem:[%s1374 + $0x28] sm:$0xff] %v1412
        %1429 = vst [vmem:[%s1374 + $0x30] sm:$0xff] %v1413
        %1430 = vst [vmem:[%s1374 + $0x38] sm:$0xff] %v1414
        %1431 = vst [vmem:[%s1374 + $0x40] sm:$0xff] %v1415
        %1432 = vst [vmem:[%s1374 + $0x48] sm:$0xff] %v1416
        %1433 = vst [vmem:[%s1374 + $0x50] sm:$0xff] %v1417
        %1434 = vst [vmem:[%s1374 + $0x58] sm:$0xff] %v1418
        %1435 = vst [vmem:[%s1374 + $0x60] sm:$0xff] %v1419
        %1436 = vst [vmem:[%s1374 + $0x68] sm:$0xff] %v1420
        %1437 = vst [vmem:[%s1374 + $0x70] sm:$0xff] %v1421
        %1438 = vst [vmem:[%s1374 + $0x78] sm:$0xff] %v1422
        %s1439 = scalar_lea.vmem [#allocation2], 768
        %v1440 = vld [vmem:[%s1439] sm:$0xff]
        %v1441 = vld [vmem:[%s1439 + $0x8] sm:$0xff]
        %v1442 = vld [vmem:[%s1439 + $0x10] sm:$0xff]
        %v1443 = vld [vmem:[%s1439 + $0x18] sm:$0xff]
        %v1444 = vld [vmem:[%s1439 + $0x20] sm:$0xff]
        %v1445 = vld [vmem:[%s1439 + $0x28] sm:$0xff]
        %v1446 = vld [vmem:[%s1439 + $0x30] sm:$0xff]
        %v1447 = vld [vmem:[%s1439 + $0x38] sm:$0xff]
        %v1448 = vld [vmem:[%s1439 + $0x40] sm:$0xff]
        %v1449 = vld [vmem:[%s1439 + $0x48] sm:$0xff]
        %v1450 = vld [vmem:[%s1439 + $0x50] sm:$0xff]
        %v1451 = vld [vmem:[%s1439 + $0x58] sm:$0xff]
        %v1452 = vld [vmem:[%s1439 + $0x60] sm:$0xff]
        %v1453 = vld [vmem:[%s1439 + $0x68] sm:$0xff]
        %v1454 = vld [vmem:[%s1439 + $0x70] sm:$0xff]
        %v1455 = vld [vmem:[%s1439 + $0x78] sm:$0xff]
        %v1456 = vmul.f32 %v770, %v850
        %v1457 = vmul.f32 %v771, %v851
        %v1458 = vmul.f32 %v772, %v852
        %v1459 = vmul.f32 %v773, %v853
        %v1460 = vmul.f32 %v774, %v854
        %v1461 = vmul.f32 %v775, %v855
        %v1462 = vmul.f32 %v776, %v856
        %v1463 = vmul.f32 %v777, %v857
        %v1464 = vmul.f32 %v778, %v858
        %v1465 = vmul.f32 %v779, %v859
        %v1466 = vmul.f32 %v780, %v860
        %v1467 = vmul.f32 %v781, %v861
        %v1468 = vmul.f32 %v782, %v862
        %v1469 = vmul.f32 %v783, %v863
        %v1470 = vmul.f32 %v784, %v864
        %v1471 = vmul.f32 %v785, %v865
        %v1472 = vadd.f32 %v1440, %v1456
        %v1473 = vadd.f32 %v1441, %v1457
        %v1474 = vadd.f32 %v1442, %v1458
        %v1475 = vadd.f32 %v1443, %v1459
        %v1476 = vadd.f32 %v1444, %v1460
        %v1477 = vadd.f32 %v1445, %v1461
        %v1478 = vadd.f32 %v1446, %v1462
        %v1479 = vadd.f32 %v1447, %v1463
        %v1480 = vadd.f32 %v1448, %v1464
        %v1481 = vadd.f32 %v1449, %v1465
        %v1482 = vadd.f32 %v1450, %v1466
        %v1483 = vadd.f32 %v1451, %v1467
        %v1484 = vadd.f32 %v1452, %v1468
        %v1485 = vadd.f32 %v1453, %v1469
        %v1486 = vadd.f32 %v1454, %v1470
        %v1487 = vadd.f32 %v1455, %v1471
        %1488 = vst [vmem:[%s1439] sm:$0xff] %v1472
        %1489 = vst [vmem:[%s1439 + $0x8] sm:$0xff] %v1473
        %1490 = vst [vmem:[%s1439 + $0x10] sm:$0xff] %v1474
        %1491 = vst [vmem:[%s1439 + $0x18] sm:$0xff] %v1475
        %1492 = vst [vmem:[%s1439 + $0x20] sm:$0xff] %v1476
        %1493 = vst [vmem:[%s1439 + $0x28] sm:$0xff] %v1477
        %1494 = vst [vmem:[%s1439 + $0x30] sm:$0xff] %v1478
        %1495 = vst [vmem:[%s1439 + $0x38] sm:$0xff] %v1479
        %1496 = vst [vmem:[%s1439 + $0x40] sm:$0xff] %v1480
        %1497 = vst [vmem:[%s1439 + $0x48] sm:$0xff] %v1481
        %1498 = vst [vmem:[%s1439 + $0x50] sm:$0xff] %v1482
        %1499 = vst [vmem:[%s1439 + $0x58] sm:$0xff] %v1483
        %1500 = vst [vmem:[%s1439 + $0x60] sm:$0xff] %v1484
        %1501 = vst [vmem:[%s1439 + $0x68] sm:$0xff] %v1485
        %1502 = vst [vmem:[%s1439 + $0x70] sm:$0xff] %v1486
        %1503 = vst [vmem:[%s1439 + $0x78] sm:$0xff] %v1487
        // Predicated region
        $region81: #{tpu_custom_call.1} parent=47 // pred_check
          %p1504 = pneg %p638
        $region82: #{tpu_custom_call.1} parent=47 // pred_check_branch
          %1506 = sbr.rel (%p1504) target = $region84
        $region83: #{tpu_custom_call.1} parent=47 // pred_region
          %v1507 = vlaneseq
          %v1508 = vshrl.u32 %v1507, 7
          %vm1509 = vcmp.eq.s32.totalorder %v1508, 0
          %v1510 = vld [vmem:[#allocation2] sm:$0xff]
          %v1511 = vld [vmem:[#allocation2 + $0x8] sm:$0xff]
          %v1512 = vld [vmem:[#allocation2 + $0x10] sm:$0xff]
          %v1513 = vld [vmem:[#allocation2 + $0x18] sm:$0xff]
          %v1514 = vld [vmem:[#allocation2 + $0x20] sm:$0xff]
          %v1515 = vld [vmem:[#allocation2 + $0x28] sm:$0xff]
          %v1516 = vld [vmem:[#allocation2 + $0x30] sm:$0xff]
          %v1517 = vld [vmem:[#allocation2 + $0x38] sm:$0xff]
          %v1518 = vld [vmem:[#allocation2 + $0x40] sm:$0xff]
          %v1519 = vld [vmem:[#allocation2 + $0x48] sm:$0xff]
          %v1520 = vld [vmem:[#allocation2 + $0x50] sm:$0xff]
          %v1521 = vld [vmem:[#allocation2 + $0x58] sm:$0xff]
          %v1522 = vld [vmem:[#allocation2 + $0x60] sm:$0xff]
          %v1523 = vld [vmem:[#allocation2 + $0x68] sm:$0xff]
          %v1524 = vld [vmem:[#allocation2 + $0x70] sm:$0xff]
          %v1525 = vld [vmem:[#allocation2 + $0x78] sm:$0xff]
          %v1526 = vadd.f32 %v1510, %v1511
          %v1527 = vadd.f32 %v1526, %v1512
          %v1528 = vadd.f32 %v1527, %v1513
          %v1529 = vadd.f32 %v1528, %v1514
          %v1530 = vadd.f32 %v1529, %v1515
          %v1531 = vadd.f32 %v1530, %v1516
          %v1532 = vadd.f32 %v1531, %v1517
          %v1533 = vadd.f32 %v1532, %v1518
          %v1534 = vadd.f32 %v1533, %v1519
          %v1535 = vadd.f32 %v1534, %v1520
          %v1536 = vadd.f32 %v1535, %v1521
          %v1537 = vadd.f32 %v1536, %v1522
          %v1538 = vadd.f32 %v1537, %v1523
          %v1539 = vadd.f32 %v1538, %v1524
          %v1540 = vadd.f32 %v1539, %v1525
          %1541 = vadd.xlane.f32.xlu0 %v1540
          %v1542 = vpop.xlane.xlu0 %1541
          %v1543 = vrot.slane %v1542, 4
          %v1544 = vadd.f32 %v1542, %v1543
          %v1545 = vrot.slane %v1544, 2
          %v1546 = vadd.f32 %v1544, %v1545
          %v1547 = vrot.slane %v1546, 1
          %v1548 = vadd.f32 %v1546, %v1547
          %s1549 = vtos %v1548
          %v1550 = vstv %s1549
          %v1551 = vsel %vm1509, %v1550, 0.0
          %vm1552 = vcmp.eq.s32.totalorder %v1508, 1
          %v1553 = vld [vmem:[%s1130] sm:$0xff]
          %v1554 = vld [vmem:[%s1130 + $0x8] sm:$0xff]
          %v1555 = vld [vmem:[%s1130 + $0x10] sm:$0xff]
          %v1556 = vld [vmem:[%s1130 + $0x18] sm:$0xff]
          %v1557 = vld [vmem:[%s1130 + $0x20] sm:$0xff]
          %v1558 = vld [vmem:[%s1130 + $0x28] sm:$0xff]
          %v1559 = vld [vmem:[%s1130 + $0x30] sm:$0xff]
          %v1560 = vld [vmem:[%s1130 + $0x38] sm:$0xff]
          %v1561 = vld [vmem:[%s1130 + $0x40] sm:$0xff]
          %v1562 = vld [vmem:[%s1130 + $0x48] sm:$0xff]
          %v1563 = vld [vmem:[%s1130 + $0x50] sm:$0xff]
          %v1564 = vld [vmem:[%s1130 + $0x58] sm:$0xff]
          %v1565 = vld [vmem:[%s1130 + $0x60] sm:$0xff]
          %v1566 = vld [vmem:[%s1130 + $0x68] sm:$0xff]
          %v1567 = vld [vmem:[%s1130 + $0x70] sm:$0xff]
          %v1568 = vld [vmem:[%s1130 + $0x78] sm:$0xff]
          %v1569 = vadd.f32 %v1553, %v1554
          %v1570 = vadd.f32 %v1569, %v1555
          %v1571 = vadd.f32 %v1570, %v1556
          %v1572 = vadd.f32 %v1571, %v1557
          %v1573 = vadd.f32 %v1572, %v1558
          %v1574 = vadd.f32 %v1573, %v1559
          %v1575 = vadd.f32 %v1574, %v1560
          %v1576 = vadd.f32 %v1575, %v1561
          %v1577 = vadd.f32 %v1576, %v1562
          %v1578 = vadd.f32 %v1577, %v1563
          %v1579 = vadd.f32 %v1578, %v1564
          %v1580 = vadd.f32 %v1579, %v1565
          %v1581 = vadd.f32 %v1580, %v1566
          %v1582 = vadd.f32 %v1581, %v1567
          %v1583 = vadd.f32 %v1582, %v1568
          %1584 = vadd.xlane.f32.xlu0 %v1583
          %v1585 = vpop.xlane.xlu0 %1584
          %v1586 = vrot.slane %v1585, 4
          %v1587 = vadd.f32 %v1585, %v1586
          %v1588 = vrot.slane %v1587, 2
          %v1589 = vadd.f32 %v1587, %v1588
          %v1590 = vrot.slane %v1589, 1
          %v1591 = vadd.f32 %v1589, %v1590
          %s1592 = vtos %v1591
          %v1593 = vstv %s1592
          %v1594 = vsel %vm1552, %v1593, %v1551
          %vm1595 = vcmp.eq.s32.totalorder %v1508, 2
          %v1596 = vld [vmem:[%s1179] sm:$0xff]
          %v1597 = vld [vmem:[%s1179 + $0x8] sm:$0xff]
          %v1598 = vld [vmem:[%s1179 + $0x10] sm:$0xff]
          %v1599 = vld [vmem:[%s1179 + $0x18] sm:$0xff]
          %v1600 = vld [vmem:[%s1179 + $0x20] sm:$0xff]
          %v1601 = vld [vmem:[%s1179 + $0x28] sm:$0xff]
          %v1602 = vld [vmem:[%s1179 + $0x30] sm:$0xff]
          %v1603 = vld [vmem:[%s1179 + $0x38] sm:$0xff]
          %v1604 = vld [vmem:[%s1179 + $0x40] sm:$0xff]
          %v1605 = vld [vmem:[%s1179 + $0x48] sm:$0xff]
          %v1606 = vld [vmem:[%s1179 + $0x50] sm:$0xff]
          %v1607 = vld [vmem:[%s1179 + $0x58] sm:$0xff]
          %v1608 = vld [vmem:[%s1179 + $0x60] sm:$0xff]
          %v1609 = vld [vmem:[%s1179 + $0x68] sm:$0xff]
          %v1610 = vld [vmem:[%s1179 + $0x70] sm:$0xff]
          %v1611 = vld [vmem:[%s1179 + $0x78] sm:$0xff]
          %v1612 = vadd.f32 %v1596, %v1597
          %v1613 = vadd.f32 %v1612, %v1598
          %v1614 = vadd.f32 %v1613, %v1599
          %v1615 = vadd.f32 %v1614, %v1600
          %v1616 = vadd.f32 %v1615, %v1601
          %v1617 = vadd.f32 %v1616, %v1602
          %v1618 = vadd.f32 %v1617, %v1603
          %v1619 = vadd.f32 %v1618, %v1604
          %v1620 = vadd.f32 %v1619, %v1605
          %v1621 = vadd.f32 %v1620, %v1606
          %v1622 = vadd.f32 %v1621, %v1607
          %v1623 = vadd.f32 %v1622, %v1608
          %v1624 = vadd.f32 %v1623, %v1609
          %v1625 = vadd.f32 %v1624, %v1610
          %v1626 = vadd.f32 %v1625, %v1611
          %1627 = vadd.xlane.f32.xlu0 %v1626
          %v1628 = vpop.xlane.xlu0 %1627
          %v1629 = vrot.slane %v1628, 4
          %v1630 = vadd.f32 %v1628, %v1629
          %v1631 = vrot.slane %v1630, 2
          %v1632 = vadd.f32 %v1630, %v1631
          %v1633 = vrot.slane %v1632, 1
          %v1634 = vadd.f32 %v1632, %v1633
          %s1635 = vtos %v1634
          %v1636 = vstv %s1635
          %v1637 = vsel %vm1595, %v1636, %v1594
          %vm1638 = vcmp.eq.s32.totalorder %v1508, 3
          %v1639 = vld [vmem:[%s1228] sm:$0xff]
          %v1640 = vld [vmem:[%s1228 + $0x8] sm:$0xff]
          %v1641 = vld [vmem:[%s1228 + $0x10] sm:$0xff]
          %v1642 = vld [vmem:[%s1228 + $0x18] sm:$0xff]
          %v1643 = vld [vmem:[%s1228 + $0x20] sm:$0xff]
          %v1644 = vld [vmem:[%s1228 + $0x28] sm:$0xff]
          %v1645 = vld [vmem:[%s1228 + $0x30] sm:$0xff]
          %v1646 = vld [vmem:[%s1228 + $0x38] sm:$0xff]
          %v1647 = vld [vmem:[%s1228 + $0x40] sm:$0xff]
          %v1648 = vld [vmem:[%s1228 + $0x48] sm:$0xff]
          %v1649 = vld [vmem:[%s1228 + $0x50] sm:$0xff]
          %v1650 = vld [vmem:[%s1228 + $0x58] sm:$0xff]
          %v1651 = vld [vmem:[%s1228 + $0x60] sm:$0xff]
          %v1652 = vld [vmem:[%s1228 + $0x68] sm:$0xff]
          %v1653 = vld [vmem:[%s1228 + $0x70] sm:$0xff]
          %v1654 = vld [vmem:[%s1228 + $0x78] sm:$0xff]
          %v1655 = vadd.f32 %v1639, %v1640
          %v1656 = vadd.f32 %v1655, %v1641
          %v1657 = vadd.f32 %v1656, %v1642
          %v1658 = vadd.f32 %v1657, %v1643
          %v1659 = vadd.f32 %v1658, %v1644
          %v1660 = vadd.f32 %v1659, %v1645
          %v1661 = vadd.f32 %v1660, %v1646
          %v1662 = vadd.f32 %v1661, %v1647
          %v1663 = vadd.f32 %v1662, %v1648
          %v1664 = vadd.f32 %v1663, %v1649
          %v1665 = vadd.f32 %v1664, %v1650
          %v1666 = vadd.f32 %v1665, %v1651
          %v1667 = vadd.f32 %v1666, %v1652
          %v1668 = vadd.f32 %v1667, %v1653
          %v1669 = vadd.f32 %v1668, %v1654
          %1670 = vadd.xlane.f32.xlu0 %v1669
          %v1671 = vpop.xlane.xlu0 %1670
          %v1672 = vrot.slane %v1671, 4
          %v1673 = vadd.f32 %v1671, %v1672
          %v1674 = vrot.slane %v1673, 2
          %v1675 = vadd.f32 %v1673, %v1674
          %v1676 = vrot.slane %v1675, 1
          %v1677 = vadd.f32 %v1675, %v1676
          %s1678 = vtos %v1677
          %v1679 = vstv %s1678
          %v1680 = vsel %vm1638, %v1679, %v1637
          %vm1681 = vcmp.eq.s32.totalorder %v1508, 4
          %v1682 = vld [vmem:[%s1325] sm:$0xff]
          %v1683 = vld [vmem:[%s1325 + $0x8] sm:$0xff]
          %v1684 = vld [vmem:[%s1325 + $0x10] sm:$0xff]
          %v1685 = vld [vmem:[%s1325 + $0x18] sm:$0xff]
          %v1686 = vld [vmem:[%s1325 + $0x20] sm:$0xff]
          %v1687 = vld [vmem:[%s1325 + $0x28] sm:$0xff]
          %v1688 = vld [vmem:[%s1325 + $0x30] sm:$0xff]
          %v1689 = vld [vmem:[%s1325 + $0x38] sm:$0xff]
          %v1690 = vld [vmem:[%s1325 + $0x40] sm:$0xff]
          %v1691 = vld [vmem:[%s1325 + $0x48] sm:$0xff]
          %v1692 = vld [vmem:[%s1325 + $0x50] sm:$0xff]
          %v1693 = vld [vmem:[%s1325 + $0x58] sm:$0xff]
          %v1694 = vld [vmem:[%s1325 + $0x60] sm:$0xff]
          %v1695 = vld [vmem:[%s1325 + $0x68] sm:$0xff]
          %v1696 = vld [vmem:[%s1325 + $0x70] sm:$0xff]
          %v1697 = vld [vmem:[%s1325 + $0x78] sm:$0xff]
          %v1698 = vadd.f32 %v1682, %v1683
          %v1699 = vadd.f32 %v1698, %v1684
          %v1700 = vadd.f32 %v1699, %v1685
          %v1701 = vadd.f32 %v1700, %v1686
          %v1702 = vadd.f32 %v1701, %v1687
          %v1703 = vadd.f32 %v1702, %v1688
          %v1704 = vadd.f32 %v1703, %v1689
          %v1705 = vadd.f32 %v1704, %v1690
          %v1706 = vadd.f32 %v1705, %v1691
          %v1707 = vadd.f32 %v1706, %v1692
          %v1708 = vadd.f32 %v1707, %v1693
          %v1709 = vadd.f32 %v1708, %v1694
          %v1710 = vadd.f32 %v1709, %v1695
          %v1711 = vadd.f32 %v1710, %v1696
          %v1712 = vadd.f32 %v1711, %v1697
          %1713 = vadd.xlane.f32.xlu0 %v1712
          %v1714 = vpop.xlane.xlu0 %1713
          %v1715 = vrot.slane %v1714, 4
          %v1716 = vadd.f32 %v1714, %v1715
          %v1717 = vrot.slane %v1716, 2
          %v1718 = vadd.f32 %v1716, %v1717
          %v1719 = vrot.slane %v1718, 1
          %v1720 = vadd.f32 %v1718, %v1719
          %s1721 = vtos %v1720
          %v1722 = vstv %s1721
          %v1723 = vsel %vm1681, %v1722, %v1680
          %vm1724 = vcmp.eq.s32.totalorder %v1508, 5
          %v1725 = vld [vmem:[%s1374] sm:$0xff]
          %v1726 = vld [vmem:[%s1374 + $0x8] sm:$0xff]
          %v1727 = vld [vmem:[%s1374 + $0x10] sm:$0xff]
          %v1728 = vld [vmem:[%s1374 + $0x18] sm:$0xff]
          %v1729 = vld [vmem:[%s1374 + $0x20] sm:$0xff]
          %v1730 = vld [vmem:[%s1374 + $0x28] sm:$0xff]
          %v1731 = vld [vmem:[%s1374 + $0x30] sm:$0xff]
          %v1732 = vld [vmem:[%s1374 + $0x38] sm:$0xff]
          %v1733 = vld [vmem:[%s1374 + $0x40] sm:$0xff]
          %v1734 = vld [vmem:[%s1374 + $0x48] sm:$0xff]
          %v1735 = vld [vmem:[%s1374 + $0x50] sm:$0xff]
          %v1736 = vld [vmem:[%s1374 + $0x58] sm:$0xff]
          %v1737 = vld [vmem:[%s1374 + $0x60] sm:$0xff]
          %v1738 = vld [vmem:[%s1374 + $0x68] sm:$0xff]
          %v1739 = vld [vmem:[%s1374 + $0x70] sm:$0xff]
          %v1740 = vld [vmem:[%s1374 + $0x78] sm:$0xff]
          %v1741 = vadd.f32 %v1725, %v1726
          %v1742 = vadd.f32 %v1741, %v1727
          %v1743 = vadd.f32 %v1742, %v1728
          %v1744 = vadd.f32 %v1743, %v1729
          %v1745 = vadd.f32 %v1744, %v1730
          %v1746 = vadd.f32 %v1745, %v1731
          %v1747 = vadd.f32 %v1746, %v1732
          %v1748 = vadd.f32 %v1747, %v1733
          %v1749 = vadd.f32 %v1748, %v1734
          %v1750 = vadd.f32 %v1749, %v1735
          %v1751 = vadd.f32 %v1750, %v1736
          %v1752 = vadd.f32 %v1751, %v1737
          %v1753 = vadd.f32 %v1752, %v1738
          %v1754 = vadd.f32 %v1753, %v1739
          %v1755 = vadd.f32 %v1754, %v1740
          %1756 = vadd.xlane.f32.xlu0 %v1755
          %v1757 = vpop.xlane.xlu0 %1756
          %v1758 = vrot.slane %v1757, 4
          %v1759 = vadd.f32 %v1757, %v1758
          %v1760 = vrot.slane %v1759, 2
          %v1761 = vadd.f32 %v1759, %v1760
          %v1762 = vrot.slane %v1761, 1
          %v1763 = vadd.f32 %v1761, %v1762
          %s1764 = vtos %v1763
          %v1765 = vstv %s1764
          %v1766 = vsel %vm1724, %v1765, %v1723
          %vm1767 = vcmp.eq.s32.totalorder %v1508, 6
          %v1768 = vld [vmem:[%s1439] sm:$0xff]
          %v1769 = vld [vmem:[%s1439 + $0x8] sm:$0xff]
          %v1770 = vld [vmem:[%s1439 + $0x10] sm:$0xff]
          %v1771 = vld [vmem:[%s1439 + $0x18] sm:$0xff]
          %v1772 = vld [vmem:[%s1439 + $0x20] sm:$0xff]
          %v1773 = vld [vmem:[%s1439 + $0x28] sm:$0xff]
          %v1774 = vld [vmem:[%s1439 + $0x30] sm:$0xff]
          %v1775 = vld [vmem:[%s1439 + $0x38] sm:$0xff]
          %v1776 = vld [vmem:[%s1439 + $0x40] sm:$0xff]
          %v1777 = vld [vmem:[%s1439 + $0x48] sm:$0xff]
          %v1778 = vld [vmem:[%s1439 + $0x50] sm:$0xff]
          %v1779 = vld [vmem:[%s1439 + $0x58] sm:$0xff]
          %v1780 = vld [vmem:[%s1439 + $0x60] sm:$0xff]
          %v1781 = vld [vmem:[%s1439 + $0x68] sm:$0xff]
          %v1782 = vld [vmem:[%s1439 + $0x70] sm:$0xff]
          %v1783 = vld [vmem:[%s1439 + $0x78] sm:$0xff]
          %v1784 = vadd.f32 %v1768, %v1769
          %v1785 = vadd.f32 %v1784, %v1770
          %v1786 = vadd.f32 %v1785, %v1771
          %v1787 = vadd.f32 %v1786, %v1772
          %v1788 = vadd.f32 %v1787, %v1773
          %v1789 = vadd.f32 %v1788, %v1774
          %v1790 = vadd.f32 %v1789, %v1775
          %v1791 = vadd.f32 %v1790, %v1776
          %v1792 = vadd.f32 %v1791, %v1777
          %v1793 = vadd.f32 %v1792, %v1778
          %v1794 = vadd.f32 %v1793, %v1779
          %v1795 = vadd.f32 %v1794, %v1780
          %v1796 = vadd.f32 %v1795, %v1781
          %v1797 = vadd.f32 %v1796, %v1782
          %v1798 = vadd.f32 %v1797, %v1783
          %1799 = vadd.xlane.f32.xlu0 %v1798
          %v1800 = vpop.xlane.xlu0 %1799
          %v1801 = vrot.slane %v1800, 4
          %v1802 = vadd.f32 %v1800, %v1801
          %v1803 = vrot.slane %v1802, 2
          %v1804 = vadd.f32 %v1802, %v1803
          %v1805 = vrot.slane %v1804, 1
          %v1806 = vadd.f32 %v1804, %v1805
          %s1807 = vtos %v1806
          %v1808 = vstv %s1807
          %v1809 = vsel %vm1767, %v1808, %v1766
          %1810 = vst [vmem:[%s621] sm:$0xff] %v1809
        $region84: #{tpu_custom_call.1} parent=47 // pred_fallthru
          _
        %s1811 = sand.u32 %s256, 1
        %s1812 = scalar_lea.sflag [#allocation5], %s1811
        %s1813 = sand.u32 %s256, 1
        %s1814 = smul.addr %s1813, 128
        %s1815 = scalar_lea.vmem [#allocation15], %s1814
        %s1816 = sand.u32 %s282, 1
        %s1817 = scalar_lea.sflag [#allocation17], %s1816
        %s1818 = sand.u32 %s282, 1
        %s1819 = smul.addr %s1818, 8
        %s1820 = scalar_lea.vmem [#allocation16], %s1819
        // Predicated region
        $region85: #{tpu_custom_call.1} parent=47 // pred_check
          %p1821 = pneg %p266
        $region86: #{tpu_custom_call.1} parent=47 // pred_check_branch
          %1823 = sbr.rel (%p1821) target = $region88
        $region87: #{tpu_custom_call.1} parent=47 // pred_region
          %s1824 = sadd.s32 %s42, %s43
          %s1825 = smul.u32 2, %s1824
          %1827 = vsyncadd %s1812, 0
          %s1828 = smul.addr %s1825, 8
          %s1829 = smul.addr %s1828, 8
          %s1830 = scalar_lea.hbm %s7, %s1829
          %s1831 = sshll.u32 %s1815, 4
          %s1832 = int_to_ptr.vmem [resolvable:$true] %s1831
          %s1833 = sshll.u32 %s1830, 4
          %s1834 = int_to_ptr.hbm [resolvable:$true] %s1833
          %1839 = dma.vmem_to_hbm [thread:$0]  %s1832, 2048, %s1834, %s1812, 1024, 1024, 64
        $region88: #{tpu_custom_call.1} parent=47 // pred_fallthru
          _
        // Predicated region
        $region89: #{tpu_custom_call.1} parent=47 // pred_check
          %p1840 = pneg %p292
        $region90: #{tpu_custom_call.1} parent=47 // pred_check_branch
          %1842 = sbr.rel (%p1840) target = $region92
        $region91: #{tpu_custom_call.1} parent=47 // pred_region
          %1844 = vsyncadd %s1817, 0
          %s1845 = smul.addr %s42, 8
          %s1846 = scalar_lea.hbm %s8, %s1845
          %s1848 = sshll.u32 %s1820, 4
          %s1849 = int_to_ptr.vmem [resolvable:$true] %s1848
          %s1850 = sshll.u32 %s1846, 4
          %s1851 = int_to_ptr.hbm [resolvable:$true] %s1850
          %1853 = dma.vmem_to_hbm [thread:$0]  %s1849, 128, %s1851, %s1817
        $region92: #{tpu_custom_call.1} parent=47 // pred_fallthru
          _
      $region48: #{tpu_custom_call.1} parent=5 // pred_fallthru
        _
      %p1854 = scmp.le.s32.totalorder 2, %s33
      // Predicated region
      $region93: #{tpu_custom_call.1} parent=5 // pred_check
        %p1855 = pneg %p1854
      $region94: #{tpu_custom_call.1} parent=5 // pred_check_branch
        %1857 = sbr.rel (%p1855) target = $region96
      $region95: #{tpu_custom_call.1} parent=5 // pred_region
        %s1858 = ssub.s32 %s33, 2
        // Predicated region
        $region97: #{tpu_custom_call.1} parent=95 // pred_check
          %p1859 = pneg %p272
        $region98: #{tpu_custom_call.1} parent=95 // pred_check_branch
          %1861 = sbr.rel (%p1859) target = $region100
        $region99: #{tpu_custom_call.1} parent=95 // pred_region
          %s1862 = sand.u32 %s257, 1
          %s1863 = scalar_lea.sflag [#allocation5], %s1862
          %s1864 = sand.u32 %s257, 1
          %s1865 = smul.addr %s1864, 128
          %s1866 = scalar_lea.vmem [#allocation15], %s1865
          %1868 = dma.done %s1863, 2048
        $region100: #{tpu_custom_call.1} parent=95 // pred_fallthru
          _
        // Predicated region
        $region101: #{tpu_custom_call.1} parent=95 // pred_check
          %p1869 = pneg %p298
        $region102: #{tpu_custom_call.1} parent=95 // pred_check_branch
          %1871 = sbr.rel (%p1869) target = $region104
        $region103: #{tpu_custom_call.1} parent=95 // pred_region
          %s1872 = sand.u32 %s283, 1
          %s1873 = scalar_lea.sflag [#allocation17], %s1872
          %s1874 = sand.u32 %s283, 1
          %s1875 = smul.addr %s1874, 8
          %s1876 = scalar_lea.vmem [#allocation16], %s1875
          %1878 = dma.done %s1873, 128
        $region104: #{tpu_custom_call.1} parent=95 // pred_fallthru
          _
      $region96: #{tpu_custom_call.1} parent=5 // pred_fallthru
        _
    $region6: #{tpu_custom_call.1} parent=1 // loop_footer
      %s37 = sadd.s32 1, %s33
    $region7: #{tpu_custom_call.1} parent=1 // loop_footer_branch
      %32 = sbr.rel target = $region3
    $region8: #{tpu_custom_call.1} parent=1 // loop_exit
      _
    %1879 = vsyncpa [#allocation4], 1
    %s1880 = scalar_lea.sflag [#allocation4], 1
    %1881 = vsyncpa %s1880, 1
    %1882 = vsyncpa [#allocation7], 1
    %s1883 = scalar_lea.sflag [#allocation7], 1
    %1884 = vsyncpa %s1883, 1
    %1885 = vsyncpa [#allocation10], 1
    %s1886 = scalar_lea.sflag [#allocation10], 1
    %1887 = vsyncpa %s1886, 1
    %1888 = vsyncpa [#allocation13], 1
    %s1889 = scalar_lea.sflag [#allocation13], 1
    %1890 = vsyncpa %s1889, 1
    %1891 = vsyncpa [#allocation5], 1
    %s1892 = scalar_lea.sflag [#allocation5], 1
    %1893 = vsyncpa %s1892, 1
    %1894 = vsyncpa [#allocation17], 1
    %s1895 = scalar_lea.sflag [#allocation17], 1
    %1896 = vsyncpa %s1895, 1

</llo_original>
